<compile_context>
chip_gen: v7x
topology: tpu7x:2x2x1
jax: 0.10.0
libtpu: 0.0.40
codegen_flags: <defaults>
</compile_context>

<pallas_src>
import functools
import math

import jax
import jax.numpy as jnp
import numpy as np
from jax import lax
from jax.experimental import pallas as pl
from jax.experimental.pallas import tpu as pltpu

EPS = 1e-5          # nn.BatchNorm1d default eps
NEG_SLOPE = 0.01    # nn.LeakyReLU() default negative_slope


def _round_up(x, m):
    return (x + m - 1) // m * m


def _pick_tile_m(m, max_tile):
    for t in (1024, 512, 256, 128, 64, 32, 16, 8):
        if t <= max_tile and m % t == 0:
            return t
    return m    # fall back to a single full-batch tile


def _compiler_params(block_bytes):
    # Double-buffered pipeline buffers + headroom, clamped well below the
    # v7x 64 MiB physical VMEM ceiling.
    limit = int(min(max(2 * block_bytes + (8 << 20), 16 << 20), 56 << 20))
    return pltpu.CompilerParams(dimension_semantics=("parallel",),
                                vmem_limit_bytes=limit)


# ---------------------------------------------------------------------------
# Kernels
# ---------------------------------------------------------------------------
def _layer_kernel(a_ref, scale_ref, shift_ref, w_ref, b_ref,
                  y_ref, stats_ref, *, apply_prologue, neg_slope):
    """One batch tile of:
         [fused BN + LeakyReLU of the previous layer's pre-activation]
         -> Linear (single deep MXU contraction)
         -> per-tile partial BatchNorm statistics (sum, sum of squares)."""
    a = a_ref[...]
    if apply_prologue:
        a = a * scale_ref[...] + shift_ref[...]          # folded BN (FMA)
        a = jnp.where(a > 0, a, neg_slope * a)           # LeakyReLU
    y = jnp.dot(a, w_ref[...],
                preferred_element_type=jnp.float32) + b_ref[...]
    y_ref[...] = y

    # Per-tile partial sums for the cross-tile BatchNorm reduction:
    # row 0 = sum(y), row 1 = sum(y*y), rows 2..7 = 0 (sublane padding).
    s = jnp.sum(y, axis=0, keepdims=True)                # (1, Dout_p)
    sq = jnp.sum(y * y, axis=0, keepdims=True)           # (1, Dout_p)
    row = lax.broadcasted_iota(jnp.int32, (8, y.shape[1]), 0)
    stats_ref[...] = jnp.where(row == 0, s,
                               jnp.where(row == 1, sq, 0.0))[None]


def _bn_act_kernel(y_ref, scale_ref, shift_ref, o_ref, *, neg_slope):
    """Final-layer epilogue: folded BatchNorm (one FMA) + LeakyReLU."""
    z = y_ref[...] * scale_ref[...] + shift_ref[...]
    o_ref[...] = jnp.where(z > 0, z, neg_slope * z)


# ---------------------------------------------------------------------------
# Pallas-call wrappers
# ---------------------------------------------------------------------------
def _linear_with_stats(a, scale, shift, w_pad, b_pad, tm, apply_prologue):
    m, din_p = a.shape
    dout_p = w_pad.shape[1]
    mt = m // tm

    block_bytes = 4 * (tm * din_p + 2 * din_p + din_p * dout_p + dout_p
                       + tm * dout_p + 8 * dout_p)
    kernel = functools.partial(_layer_kernel, apply_prologue=apply_prologue,
                               neg_slope=NEG_SLOPE)
    y, stats = pl.pallas_call(
        kernel,
        grid=(mt,),
        in_specs=[
            pl.BlockSpec((tm, din_p), lambda i: (i, 0)),        # activations
            pl.BlockSpec((1, din_p), lambda i: (0, 0)),         # prev BN scale
            pl.BlockSpec((1, din_p), lambda i: (0, 0)),         # prev BN shift
            pl.BlockSpec((din_p, dout_p), lambda i: (0, 0)),    # weight
            pl.BlockSpec((1, dout_p), lambda i: (0, 0)),        # bias
        ],
        out_specs=(
            pl.BlockSpec((tm, dout_p), lambda i: (i, 0)),       # pre-activation
            pl.BlockSpec((1, 8, dout_p), lambda i: (i, 0, 0)),  # partial stats
        ),
        out_shape=(
            jax.ShapeDtypeStruct((m, dout_p), jnp.float32),
            jax.ShapeDtypeStruct((mt, 8, dout_p), jnp.float32),
        ),
        compiler_params=_compiler_params(block_bytes),
    )(a, scale, shift, w_pad, b_pad)
    return y, stats


def _bn_act(y, scale, shift, tm):
    m, dp = y.shape
    mt = m // tm
    block_bytes = 4 * (2 * tm * dp + 2 * dp)
    kernel = functools.partial(_bn_act_kernel, neg_slope=NEG_SLOPE)
    return pl.pallas_call(
        kernel,
        grid=(mt,),
        in_specs=[
            pl.BlockSpec((tm, dp), lambda i: (i, 0)),
            pl.BlockSpec((1, dp), lambda i: (0, 0)),
            pl.BlockSpec((1, dp), lambda i: (0, 0)),
        ],
        out_specs=pl.BlockSpec((tm, dp), lambda i: (i, 0)),
        out_shape=jax.ShapeDtypeStruct((m, dp), jnp.float32),
        compiler_params=_compiler_params(block_bytes),
    )(y, scale, shift)


# ---------------------------------------------------------------------------
# NeuralNet forward
# ---------------------------------------------------------------------------
def neuralnet_forward(x, params, block_m=512):
    """NeuralNet forward: Linear -> BatchNorm1d (train) -> LeakyReLU per layer.

    params: list of (weight (out, in), bias (out,), gamma (out,), beta (out,))
            in PyTorch nn.Linear / nn.BatchNorm1d layout.
    """
    m = x.shape[0]
    tm = _pick_tile_m(m, block_m)

    din0 = x.shape[1]
    din0_p = _round_up(din0, 128)
    a = jnp.pad(x.astype(jnp.float32), ((0, 0), (0, din0_p - din0)))

    scale = shift = None
    for (w, b, gamma, beta) in params:
        dout, din = w.shape
        din_p = _round_up(din, 128)
        dout_p = _round_up(dout, 128)

        w_pad = jnp.zeros((din_p, dout_p), jnp.float32)
        w_pad = w_pad.at[:din, :dout].set(jnp.asarray(w, jnp.float32).T)
        b_pad = jnp.zeros((1, dout_p), jnp.float32)
        b_pad = b_pad.at[0, :dout].set(jnp.asarray(b, jnp.float32))
        gamma_p = jnp.zeros((dout_p,), jnp.float32).at[:dout].set(gamma)
        beta_p = jnp.zeros((dout_p,), jnp.float32).at[:dout].set(beta)

        if scale is None:                       # first layer: no BN prologue
            scale_in = jnp.zeros((1, din_p), jnp.float32)
            shift_in = jnp.zeros((1, din_p), jnp.float32)
            apply_prologue = False
        else:
            scale_in, shift_in = scale, shift
            apply_prologue = True

        a, stats = _linear_with_stats(a, scale_in, shift_in, w_pad, b_pad, tm,
                                      apply_prologue)

        # Cross-tile BatchNorm reduction (training mode: batch statistics,
        # biased variance), folded into one (scale, shift) pair per feature.
        col_sum = jnp.sum(stats[:, 0, :], axis=0)
        col_sq = jnp.sum(stats[:, 1, :], axis=0)
        mean = col_sum / m
        var = jnp.maximum(col_sq / m - mean * mean, 0.0)
        s_vec = gamma_p * lax.rsqrt(var + EPS)
        scale = s_vec.reshape(1, dout_p)
        shift = (beta_p - mean * s_vec).reshape(1, dout_p)

    out_pad = _bn_act(a, scale, shift, tm)
    return out_pad[:, :params[-1][0].shape[0]]


# ---------------------------------------------------------------------------
# Parameters, reference, demo
# ---------------------------------------------------------------------------
def init_params(key, layer_sizes):
    """Deterministic synthetic parameters (PyTorch module layouts)."""
    params = []
    for din, dout in zip(layer_sizes[:-1], layer_sizes[1:]):
        key, kw, kb = jax.random.split(key, 3)
        bound = 1.0 / math.sqrt(din)
        w = jax.random.uniform(kw, (dout, din), jnp.float32, -bound, bound)
        b = jax.random.uniform(kb, (dout,), jnp.float32, -bound, bound)
        gamma = jnp.ones((dout,), jnp.float32)    # BatchNorm1d.weight init
        beta = jnp.zeros((dout,), jnp.float32)    # BatchNorm1d.bias init
        params.append((w, b, gamma, beta))
    return params


def neuralnet_ref(x, params):
    """Pure-JAX (no Pallas) reference for verification."""
    h = x.astype(jnp.float32)
    for (w, b, gamma, beta) in params:
        y = jnp.dot(h, jnp.asarray(w, jnp.float32).T,
                    precision=lax.Precision.HIGHEST) + b
        mean = jnp.mean(y, axis=0)
        var = jnp.mean((y - mean) ** 2, axis=0)          # biased (train mode)
        y = (y - mean) * lax.rsqrt(var + EPS) * gamma + beta
        h = jnp.where(y > 0, y, NEG_SLOPE * y)
    return h


if __name__ == "__main__":
    layer_sizes = [300, 150, 50]     # NeuralNet default layer_sizes
    batch = 128

    key = jax.random.PRNGKey(0)
    kx, kp = jax.random.split(key)
    x = jax.random.normal(kx, (batch, layer_sizes[0]), jnp.float32)
    params = init_params(kp, layer_sizes)

    # block_m=64 -> 2 batch tiles even at this small demo size, exercising the
    # cross-tile BatchNorm reduction and the parallel M grid axis.
    fwd = jax.jit(functools.partial(neuralnet_forward, block_m=64))
    out = jax.block_until_ready(fwd(x, params))
    assert out.shape == (batch, layer_sizes[-1]), out.shape

    ref = neuralnet_ref(x, params)
    np.testing.assert_allclose(np.asarray(out), np.asarray(ref),
                               rtol=5e-4, atol=5e-4)
    print("KERNEL_OK")
</pallas_src>

<mosaic_0001>
module attributes {stable_mosaic.version = 11 : i64} {
  func.func @_bn_act_kernel(%arg0: i32, %arg1: memref<64x128xf32, #tpu.memory_space<vmem>>, %arg2: memref<1x128xf32, #tpu.memory_space<vmem>>, %arg3: memref<1x128xf32, #tpu.memory_space<vmem>>, %arg4: memref<64x128xf32, #tpu.memory_space<vmem>>) attributes {dimension_semantics = [#tpu.dimension_semantics<parallel>], iteration_bounds = array<i64: 2>, scalar_prefetch = 0 : i64, scratch_operands = 0 : i64, tpu.core_type = #tpu.core_type<tc>, window_params = [{transform_indices = @transform_0, window_bounds = array<i64: 64, 128>}, {pipeline_mode = #tpu.pipeline_mode<synchronous>, transform_indices = @transform_1, window_bounds = array<i64: 1, 128>}, {pipeline_mode = #tpu.pipeline_mode<synchronous>, transform_indices = @transform_2, window_bounds = array<i64: 1, 128>}, {transform_indices = @transform_3, window_bounds = array<i64: 64, 128>}]} {
    %c0 = arith.constant 0 : index
    %c0_0 = arith.constant 0 : index
    %0 = vector.load %arg1[%c0, %c0_0] : memref<64x128xf32, #tpu.memory_space<vmem>>, vector<64x128xf32>
    %c0_1 = arith.constant 0 : index
    %c0_2 = arith.constant 0 : index
    %1 = vector.load %arg2[%c0_1, %c0_2] : memref<1x128xf32, #tpu.memory_space<vmem>>, vector<1x128xf32>
    %2 = vector.broadcast %1 : vector<1x128xf32> to vector<64x128xf32>
    %3 = arith.mulf %0, %2 : vector<64x128xf32>
    %c0_3 = arith.constant 0 : index
    %c0_4 = arith.constant 0 : index
    %4 = vector.load %arg3[%c0_3, %c0_4] : memref<1x128xf32, #tpu.memory_space<vmem>>, vector<1x128xf32>
    %5 = vector.broadcast %4 : vector<1x128xf32> to vector<64x128xf32>
    %6 = arith.addf %3, %5 : vector<64x128xf32>
    %cst = arith.constant 0.000000e+00 : f32
    %7 = vector.broadcast %cst : f32 to vector<64x128xf32>
    %8 = arith.cmpf ogt, %6, %7 : vector<64x128xf32>
    %cst_5 = arith.constant 0.00999999977 : f32
    %9 = vector.broadcast %cst_5 : f32 to vector<64x128xf32>
    %10 = arith.mulf %9, %6 : vector<64x128xf32>
    %11 = arith.select %8, %6, %10 : vector<64x128xi1>, vector<64x128xf32>
    %c0_6 = arith.constant 0 : index
    %c0_7 = arith.constant 0 : index
    %12 = vector.load %arg4[%c0_6, %c0_7] : memref<64x128xf32, #tpu.memory_space<vmem>>, vector<64x128xf32>
    tpu.vector_store %arg4[%c0_6, %c0_7], %11 {strides = array<i32>} : memref<64x128xf32, #tpu.memory_space<vmem>>, vector<64x128xf32>,
    return
  }
  func.func @transform_0(%arg0: i32) -> (i32, i32) {
    %c0_i32 = arith.constant 0 : i32
    %c0_i32_0 = arith.constant 0 : i32
    return %arg0, %c0_i32 : i32, i32
  }
  func.func @transform_1(%arg0: i32) -> (i32, i32) {
    %c0_i32 = arith.constant 0 : i32
    %c0_i32_0 = arith.constant 0 : i32
    %c0_i32_1 = arith.constant 0 : i32
    return %c0_i32, %c0_i32_0 : i32, i32
  }
  func.func @transform_2(%arg0: i32) -> (i32, i32) {
    %c0_i32 = arith.constant 0 : i32
    %c0_i32_0 = arith.constant 0 : i32
    %c0_i32_1 = arith.constant 0 : i32
    return %c0_i32, %c0_i32_0 : i32, i32
  }
  func.func @transform_3(%arg0: i32) -> (i32, i32) {
    %c0_i32 = arith.constant 0 : i32
    %c0_i32_0 = arith.constant 0 : i32
    return %arg0, %c0_i32 : i32, i32
  }
}

module attributes {stable_mosaic.version = 11 : i64} {
  func.func @_layer_kernel(%arg0: i32, %arg1: memref<64x384xf32, #tpu.memory_space<vmem>>, %arg2: memref<1x384xf32, #tpu.memory_space<vmem>>, %arg3: memref<1x384xf32, #tpu.memory_space<vmem>>, %arg4: memref<384x256xf32, #tpu.memory_space<vmem>>, %arg5: memref<1x256xf32, #tpu.memory_space<vmem>>, %arg6: memref<64x256xf32, #tpu.memory_space<vmem>>, %arg7: memref<1x8x256xf32, #tpu.memory_space<vmem>>) attributes {dimension_semantics = [#tpu.dimension_semantics<parallel>], iteration_bounds = array<i64: 2>, scalar_prefetch = 0 : i64, scratch_operands = 0 : i64, tpu.core_type = #tpu.core_type<tc>, window_params = [{transform_indices = @transform_0, window_bounds = array<i64: 64, 384>}, {pipeline_mode = #tpu.pipeline_mode<synchronous>, transform_indices = @transform_1, window_bounds = array<i64: 1, 384>}, {pipeline_mode = #tpu.pipeline_mode<synchronous>, transform_indices = @transform_2, window_bounds = array<i64: 1, 384>}, {pipeline_mode = #tpu.pipeline_mode<synchronous>, transform_indices = @transform_3, window_bounds = array<i64: 384, 256>}, {pipeline_mode = #tpu.pipeline_mode<synchronous>, transform_indices = @transform_4, window_bounds = array<i64: 1, 256>}, {transform_indices = @transform_5, window_bounds = array<i64: 64, 256>}, {transform_indices = @transform_6, window_bounds = array<i64: 1, 8, 256>}]} {
    %c0 = arith.constant 0 : index
    %c0_0 = arith.constant 0 : index
    %0 = vector.load %arg1[%c0, %c0_0] : memref<64x384xf32, #tpu.memory_space<vmem>>, vector<64x384xf32>
    %c0_1 = arith.constant 0 : index
    %c0_2 = arith.constant 0 : index
    %1 = vector.load %arg4[%c0_1, %c0_2] : memref<384x256xf32, #tpu.memory_space<vmem>>, vector<384x256xf32>
    %cst = arith.constant dense<0.000000e+00> : vector<64x256xf32>
    %2 = tpu.matmul %0, %1, %cst {dimension_numbers = #tpu.dot_dimension_numbers<[1], [0], [0], [1], [0, 0, 1, 1], [], []>} : vector<64x384xf32>, vector<384x256xf32>, vector<64x256xf32> -> vector<64x256xf32>
    %c0_3 = arith.constant 0 : index
    %c0_4 = arith.constant 0 : index
    %3 = vector.load %arg5[%c0_3, %c0_4] : memref<1x256xf32, #tpu.memory_space<vmem>>, vector<1x256xf32>
    %4 = vector.broadcast %3 : vector<1x256xf32> to vector<64x256xf32>
    %5 = arith.addf %2, %4 : vector<64x256xf32>
    %c0_5 = arith.constant 0 : index
    %c0_6 = arith.constant 0 : index
    %6 = vector.load %arg6[%c0_5, %c0_6] : memref<64x256xf32, #tpu.memory_space<vmem>>, vector<64x256xf32>
    tpu.vector_store %arg6[%c0_5, %c0_6], %5 {strides = array<i32>} : memref<64x256xf32, #tpu.memory_space<vmem>>, vector<64x256xf32>,
    %cst_7 = arith.constant dense<0.000000e+00> : vector<256xf32>
    %7 = vector.multi_reduction <add>, %5, %cst_7 [0] : vector<64x256xf32> to vector<256xf32>
    %8 = vector.shape_cast %7 : vector<256xf32> to vector<1x256xf32>
    %9 = arith.mulf %5, %5 : vector<64x256xf32>
    %cst_8 = arith.constant dense<0.000000e+00> : vector<256xf32>
    %10 = vector.multi_reduction <add>, %9, %cst_8 [0] : vector<64x256xf32> to vector<256xf32>
    %11 = vector.shape_cast %10 : vector<256xf32> to vector<1x256xf32>
    %12 = tpu.iota {dimensions = array<i32: 0>} : vector<8x256xi32>
    %c0_i32 = arith.constant 0 : i32
    %13 = vector.broadcast %c0_i32 : i32 to vector<8x256xi32>
    %14 = arith.cmpi eq, %12, %13 : vector<8x256xi32>
    %c1_i32 = arith.constant 1 : i32
    %15 = vector.broadcast %c1_i32 : i32 to vector<8x256xi32>
    %16 = arith.cmpi eq, %12, %15 : vector<8x256xi32>
    %cst_9 = arith.constant 0.000000e+00 : f32
    %17 = vector.shape_cast %11 : vector<1x256xf32> to vector<1x256xf32>
    %18 = vector.broadcast %17 : vector<1x256xf32> to vector<8x256xf32>
    %19 = vector.broadcast %cst_9 : f32 to vector<8x256xf32>
    %20 = arith.select %16, %18, %19 : vector<8x256xi1>, vector<8x256xf32>
    %21 = vector.shape_cast %8 : vector<1x256xf32> to vector<1x256xf32>
    %22 = vector.broadcast %21 : vector<1x256xf32> to vector<8x256xf32>
    %23 = arith.select %14, %22, %20 : vector<8x256xi1>, vector<8x256xf32>
    %24 = vector.shape_cast %23 : vector<8x256xf32> to vector<1x8x256xf32>
    %c0_10 = arith.constant 0 : index
    %c0_11 = arith.constant 0 : index
    %c0_12 = arith.constant 0 : index
    %25 = vector.load %arg7[%c0_10, %c0_11, %c0_12] : memref<1x8x256xf32, #tpu.memory_space<vmem>>, vector<1x8x256xf32>
    tpu.vector_store %arg7[%c0_10, %c0_11, %c0_12], %24 {strides = array<i32>} : memref<1x8x256xf32, #tpu.memory_space<vmem>>, vector<1x8x256xf32>,
    return
  }
  func.func @transform_0(%arg0: i32) -> (i32, i32) {
    %c0_i32 = arith.constant 0 : i32
    %c0_i32_0 = arith.constant 0 : i32
    return %arg0, %c0_i32 : i32, i32
  }
  func.func @transform_1(%arg0: i32) -> (i32, i32) {
    %c0_i32 = arith.constant 0 : i32
    %c0_i32_0 = arith.constant 0 : i32
    %c0_i32_1 = arith.constant 0 : i32
    return %c0_i32, %c0_i32_0 : i32, i32
  }
  func.func @transform_2(%arg0: i32) -> (i32, i32) {
    %c0_i32 = arith.constant 0 : i32
    %c0_i32_0 = arith.constant 0 : i32
    %c0_i32_1 = arith.constant 0 : i32
    return %c0_i32, %c0_i32_0 : i32, i32
  }
  func.func @transform_3(%arg0: i32) -> (i32, i32) {
    %c0_i32 = arith.constant 0 : i32
    %c0_i32_0 = arith.constant 0 : i32
    %c0_i32_1 = arith.constant 0 : i32
    return %c0_i32, %c0_i32_0 : i32, i32
  }
  func.func @transform_4(%arg0: i32) -> (i32, i32) {
    %c0_i32 = arith.constant 0 : i32
    %c0_i32_0 = arith.constant 0 : i32
    %c0_i32_1 = arith.constant 0 : i32
    return %c0_i32, %c0_i32_0 : i32, i32
  }
  func.func @transform_5(%arg0: i32) -> (i32, i32) {
    %c0_i32 = arith.constant 0 : i32
    %c0_i32_0 = arith.constant 0 : i32
    return %arg0, %c0_i32 : i32, i32
  }
  func.func @transform_6(%arg0: i32) -> (i32, i32, i32) {
    %c0_i32 = arith.constant 0 : i32
    %c0_i32_0 = arith.constant 0 : i32
    %c0_i32_1 = arith.constant 0 : i32
    return %arg0, %c0_i32, %c0_i32_0 : i32, i32, i32
  }
}

module attributes {stable_mosaic.version = 11 : i64} {
  func.func @_layer_kernel(%arg0: i32, %arg1: memref<64x256xf32, #tpu.memory_space<vmem>>, %arg2: memref<1x256xf32, #tpu.memory_space<vmem>>, %arg3: memref<1x256xf32, #tpu.memory_space<vmem>>, %arg4: memref<256x128xf32, #tpu.memory_space<vmem>>, %arg5: memref<1x128xf32, #tpu.memory_space<vmem>>, %arg6: memref<64x128xf32, #tpu.memory_space<vmem>>, %arg7: memref<1x8x128xf32, #tpu.memory_space<vmem>>) attributes {dimension_semantics = [#tpu.dimension_semantics<parallel>], iteration_bounds = array<i64: 2>, scalar_prefetch = 0 : i64, scratch_operands = 0 : i64, tpu.core_type = #tpu.core_type<tc>, window_params = [{transform_indices = @transform_0, window_bounds = array<i64: 64, 256>}, {pipeline_mode = #tpu.pipeline_mode<synchronous>, transform_indices = @transform_1, window_bounds = array<i64: 1, 256>}, {pipeline_mode = #tpu.pipeline_mode<synchronous>, transform_indices = @transform_2, window_bounds = array<i64: 1, 256>}, {pipeline_mode = #tpu.pipeline_mode<synchronous>, transform_indices = @transform_3, window_bounds = array<i64: 256, 128>}, {pipeline_mode = #tpu.pipeline_mode<synchronous>, transform_indices = @transform_4, window_bounds = array<i64: 1, 128>}, {transform_indices = @transform_5, window_bounds = array<i64: 64, 128>}, {transform_indices = @transform_6, window_bounds = array<i64: 1, 8, 128>}]} {
    %c0 = arith.constant 0 : index
    %c0_0 = arith.constant 0 : index
    %0 = vector.load %arg1[%c0, %c0_0] : memref<64x256xf32, #tpu.memory_space<vmem>>, vector<64x256xf32>
    %c0_1 = arith.constant 0 : index
    %c0_2 = arith.constant 0 : index
    %1 = vector.load %arg2[%c0_1, %c0_2] : memref<1x256xf32, #tpu.memory_space<vmem>>, vector<1x256xf32>
    %2 = vector.broadcast %1 : vector<1x256xf32> to vector<64x256xf32>
    %3 = arith.mulf %0, %2 : vector<64x256xf32>
    %c0_3 = arith.constant 0 : index
    %c0_4 = arith.constant 0 : index
    %4 = vector.load %arg3[%c0_3, %c0_4] : memref<1x256xf32, #tpu.memory_space<vmem>>, vector<1x256xf32>
    %5 = vector.broadcast %4 : vector<1x256xf32> to vector<64x256xf32>
    %6 = arith.addf %3, %5 : vector<64x256xf32>
    %cst = arith.constant 0.000000e+00 : f32
    %7 = vector.broadcast %cst : f32 to vector<64x256xf32>
    %8 = arith.cmpf ogt, %6, %7 : vector<64x256xf32>
    %cst_5 = arith.constant 0.00999999977 : f32
    %9 = vector.broadcast %cst_5 : f32 to vector<64x256xf32>
    %10 = arith.mulf %9, %6 : vector<64x256xf32>
    %11 = arith.select %8, %6, %10 : vector<64x256xi1>, vector<64x256xf32>
    %c0_6 = arith.constant 0 : index
    %c0_7 = arith.constant 0 : index
    %12 = vector.load %arg4[%c0_6, %c0_7] : memref<256x128xf32, #tpu.memory_space<vmem>>, vector<256x128xf32>
    %cst_8 = arith.constant dense<0.000000e+00> : vector<64x128xf32>
    %13 = tpu.matmul %11, %12, %cst_8 {dimension_numbers = #tpu.dot_dimension_numbers<[1], [0], [0], [1], [0, 0, 1, 1], [], []>} : vector<64x256xf32>, vector<256x128xf32>, vector<64x128xf32> -> vector<64x128xf32>
    %c0_9 = arith.constant 0 : index
    %c0_10 = arith.constant 0 : index
    %14 = vector.load %arg5[%c0_9, %c0_10] : memref<1x128xf32, #tpu.memory_space<vmem>>, vector<1x128xf32>
    %15 = vector.broadcast %14 : vector<1x128xf32> to vector<64x128xf32>
    %16 = arith.addf %13, %15 : vector<64x128xf32>
    %c0_11 = arith.constant 0 : index
    %c0_12 = arith.constant 0 : index
    %17 = vector.load %arg6[%c0_11, %c0_12] : memref<64x128xf32, #tpu.memory_space<vmem>>, vector<64x128xf32>
    tpu.vector_store %arg6[%c0_11, %c0_12], %16 {strides = array<i32>} : memref<64x128xf32, #tpu.memory_space<vmem>>, vector<64x128xf32>,
    %cst_13 = arith.constant dense<0.000000e+00> : vector<128xf32>
    %18 = vector.multi_reduction <add>, %16, %cst_13 [0] : vector<64x128xf32> to vector<128xf32>
    %19 = vector.shape_cast %18 : vector<128xf32> to vector<1x128xf32>
    %20 = arith.mulf %16, %16 : vector<64x128xf32>
    %cst_14 = arith.constant dense<0.000000e+00> : vector<128xf32>
    %21 = vector.multi_reduction <add>, %20, %cst_14 [0] : vector<64x128xf32> to vector<128xf32>
    %22 = vector.shape_cast %21 : vector<128xf32> to vector<1x128xf32>
    %23 = tpu.iota {dimensions = array<i32: 0>} : vector<8x128xi32>
    %c0_i32 = arith.constant 0 : i32
    %24 = vector.broadcast %c0_i32 : i32 to vector<8x128xi32>
    %25 = arith.cmpi eq, %23, %24 : vector<8x128xi32>
    %c1_i32 = arith.constant 1 : i32
    %26 = vector.broadcast %c1_i32 : i32 to vector<8x128xi32>
    %27 = arith.cmpi eq, %23, %26 : vector<8x128xi32>
    %cst_15 = arith.constant 0.000000e+00 : f32
    %28 = vector.shape_cast %22 : vector<1x128xf32> to vector<1x128xf32>
    %29 = vector.broadcast %28 : vector<1x128xf32> to vector<8x128xf32>
    %30 = vector.broadcast %cst_15 : f32 to vector<8x128xf32>
    %31 = arith.select %27, %29, %30 : vector<8x128xi1>, vector<8x128xf32>
    %32 = vector.shape_cast %19 : vector<1x128xf32> to vector<1x128xf32>
    %33 = vector.broadcast %32 : vector<1x128xf32> to vector<8x128xf32>
    %34 = arith.select %25, %33, %31 : vector<8x128xi1>, vector<8x128xf32>
    %35 = vector.shape_cast %34 : vector<8x128xf32> to vector<1x8x128xf32>
    %c0_16 = arith.constant 0 : index
    %c0_17 = arith.constant 0 : index
    %c0_18 = arith.constant 0 : index
    %36 = vector.load %arg7[%c0_16, %c0_17, %c0_18] : memref<1x8x128xf32, #tpu.memory_space<vmem>>, vector<1x8x128xf32>
    tpu.vector_store %arg7[%c0_16, %c0_17, %c0_18], %35 {strides = array<i32>} : memref<1x8x128xf32, #tpu.memory_space<vmem>>, vector<1x8x128xf32>,
    return
  }
  func.func @transform_0(%arg0: i32) -> (i32, i32) {
    %c0_i32 = arith.constant 0 : i32
    %c0_i32_0 = arith.constant 0 : i32
    return %arg0, %c0_i32 : i32, i32
  }
  func.func @transform_1(%arg0: i32) -> (i32, i32) {
    %c0_i32 = arith.constant 0 : i32
    %c0_i32_0 = arith.constant 0 : i32
    %c0_i32_1 = arith.constant 0 : i32
    return %c0_i32, %c0_i32_0 : i32, i32
  }
  func.func @transform_2(%arg0: i32) -> (i32, i32) {
    %c0_i32 = arith.constant 0 : i32
    %c0_i32_0 = arith.constant 0 : i32
    %c0_i32_1 = arith.constant 0 : i32
    return %c0_i32, %c0_i32_0 : i32, i32
  }
  func.func @transform_3(%arg0: i32) -> (i32, i32) {
    %c0_i32 = arith.constant 0 : i32
    %c0_i32_0 = arith.constant 0 : i32
    %c0_i32_1 = arith.constant 0 : i32
    return %c0_i32, %c0_i32_0 : i32, i32
  }
  func.func @transform_4(%arg0: i32) -> (i32, i32) {
    %c0_i32 = arith.constant 0 : i32
    %c0_i32_0 = arith.constant 0 : i32
    %c0_i32_1 = arith.constant 0 : i32
    return %c0_i32, %c0_i32_0 : i32, i32
  }
  func.func @transform_5(%arg0: i32) -> (i32, i32) {
    %c0_i32 = arith.constant 0 : i32
    %c0_i32_0 = arith.constant 0 : i32
    return %arg0, %c0_i32 : i32, i32
  }
  func.func @transform_6(%arg0: i32) -> (i32, i32, i32) {
    %c0_i32 = arith.constant 0 : i32
    %c0_i32_0 = arith.constant 0 : i32
    %c0_i32_1 = arith.constant 0 : i32
    return %arg0, %c0_i32, %c0_i32_0 : i32, i32, i32
  }
}

</mosaic_0001>

<llo_original>
// kernel: neuralnet_forward.5
$region0: #{neuralnet_forward.5}
  #allocation0 [shape = 'u32[]', space=smem, size = 0x4, offset = 0x4, fixed_abs, tag = 'smem constant byte address 0x4 - core index']
  #allocation1 [shape = 'u32[144,128]{1,0:T(1,128)}', space=vmem, size = 0x12000, scoped, tag = 'internal scratch']
  %s0 = inlined_call_operand.vmem [shape: f32[128,128], index: 0, kind: input, shape index: {}]
  %s1 = inlined_call_operand.vmem [shape: f32[1,128], index: 1, kind: input, shape index: {}]
  %s2 = inlined_call_operand.vmem [shape: f32[1,128], index: 2, kind: input, shape index: {}]
  %s3 = inlined_call_operand.vmem [shape: f32[128,128], index: 3, kind: output, shape index: {}]
  %s4 = sld [smem:[#allocation0]]
  $region45: #{neuralnet_forward.5} parent=0
    _
  %s6 = ssub.s32 1, %s4
  %s7 = scalar_select 0, %s6, %s4
  loop: start=0, step=1, limit=4
  $region2: #{neuralnet_forward.5} parent=0 // loop_pre_header
    _
  $region3: #{neuralnet_forward.5} parent=0 // loop_header
    %s9 = sphi 0, %s13
    %p10 = scmp.ge.s32.totalorder %s9, 4
    %s19 = sphi 0, %s21
    %s22 = sphi 0, %s19
    %s23 = sphi 0, %s22
    %s39 = sphi 0, %s23
    %s43 = sphi 0, %s43
    %s45 = sphi 0, %s43
    %s46 = sphi 0, %s45
    %s60 = sphi 0, %s46
    %s64 = sphi 0, %s64
    %s66 = sphi 0, %s64
    %s67 = sphi 0, %s66
    %s81 = sphi 0, %s67
    %s87 = sphi 0, %s89
    %s90 = sphi 0, %s87
    %s91 = sphi 0, %s90
    %s107 = sphi 0, %s91
  $region4: #{neuralnet_forward.5} parent=0 // loop_header_branch
    %12 = sbr.rel (%p10) target = $region8
  $region5: #{neuralnet_forward.5} parent=0 // loop_body
    %s14 = ssub.s32 %s9, 1
    %s15 = ssub.s32 %s9, 2
    %s16 = sadd.s32 %s9, 1
    %s17 = ssub.s32 %s9, %s16
    %p18 = scmp.eq.s32.totalorder %s17, 0
    %s20 = sadd.s32 %s19, 1
    %s21 = scalar_select %p18, %s19, %s20
    %p24 = pneg %p18
    %p25 = scmp.eq.s32.totalorder %s9, 1
    %p26 = por %p24, %p25
    %p27 = scmp.ne.s32.totalorder %s19, %s22
    %p28 = scmp.eq.s32.totalorder %s9, 0
    %p29 = por %p27, %p28
    %p30 = scmp.ne.s32.totalorder %s19, %s22
    %p31 = scmp.eq.s32.totalorder %s14, 1
    %p32 = por %p30, %p31
    %p33 = scmp.ne.s32.totalorder %s22, %s23
    %p34 = scmp.eq.s32.totalorder %s14, 0
    %p35 = por %p33, %p34
    %p36 = scmp.ne.s32.totalorder %s22, %s23
    %p37 = scmp.eq.s32.totalorder %s15, 1
    %p38 = por %p36, %p37
    %p40 = scmp.ne.s32.totalorder %s23, %s39
    %p41 = scmp.eq.s32.totalorder %s15, 0
    %p42 = por %p40, %p41
    %s44 = sadd.s32 %s43, 1
    %p47 = scmp.eq.s32.totalorder %s9, 1
    %p48 = scmp.ne.s32.totalorder %s43, %s45
    %p49 = scmp.eq.s32.totalorder %s9, 0
    %p50 = por %p48, %p49
    %p51 = scmp.ne.s32.totalorder %s43, %s45
    %p52 = scmp.eq.s32.totalorder %s14, 1
    %p53 = por %p51, %p52
    %p54 = scmp.ne.s32.totalorder %s45, %s46
    %p55 = scmp.eq.s32.totalorder %s14, 0
    %p56 = por %p54, %p55
    %p57 = scmp.ne.s32.totalorder %s45, %s46
    %p58 = scmp.eq.s32.totalorder %s15, 1
    %p59 = por %p57, %p58
    %p61 = scmp.ne.s32.totalorder %s46, %s60
    %p62 = scmp.eq.s32.totalorder %s15, 0
    %p63 = por %p61, %p62
    %s65 = sadd.s32 %s64, 1
    %p68 = scmp.eq.s32.totalorder %s9, 1
    %p69 = scmp.ne.s32.totalorder %s64, %s66
    %p70 = scmp.eq.s32.totalorder %s9, 0
    %p71 = por %p69, %p70
    %p72 = scmp.ne.s32.totalorder %s64, %s66
    %p73 = scmp.eq.s32.totalorder %s14, 1
    %p74 = por %p72, %p73
    %p75 = scmp.ne.s32.totalorder %s66, %s67
    %p76 = scmp.eq.s32.totalorder %s14, 0
    %p77 = por %p75, %p76
    %p78 = scmp.ne.s32.totalorder %s66, %s67
    %p79 = scmp.eq.s32.totalorder %s15, 1
    %p80 = por %p78, %p79
    %p82 = scmp.ne.s32.totalorder %s67, %s81
    %p83 = scmp.eq.s32.totalorder %s15, 0
    %p84 = por %p82, %p83
    %s85 = ssub.s32 %s9, %s16
    %p86 = scmp.eq.s32.totalorder %s85, 0
    %s88 = sadd.s32 %s87, 1
    %s89 = scalar_select %p86, %s87, %s88
    %p92 = pneg %p86
    %p93 = scmp.eq.s32.totalorder %s9, 1
    %p94 = por %p92, %p93
    %p95 = scmp.ne.s32.totalorder %s87, %s90
    %p96 = scmp.eq.s32.totalorder %s9, 0
    %p97 = por %p95, %p96
    %p98 = scmp.ne.s32.totalorder %s87, %s90
    %p99 = scmp.eq.s32.totalorder %s14, 1
    %p100 = por %p98, %p99
    %p101 = scmp.ne.s32.totalorder %s90, %s91
    %p102 = scmp.eq.s32.totalorder %s14, 0
    %p103 = por %p101, %p102
    %p104 = scmp.ne.s32.totalorder %s90, %s91
    %p105 = scmp.eq.s32.totalorder %s15, 1
    %p106 = por %p104, %p105
    %p108 = scmp.ne.s32.totalorder %s91, %s107
    %p109 = scmp.eq.s32.totalorder %s15, 0
    %p110 = por %p108, %p109
    %p111 = scmp.le.s32.totalorder 1, %s9
    %p112 = scmp.lt.s32.totalorder %s9, 3
    %p113 = pnand %p111, %p112
    %p114 = pneg %p113
    // Predicated region
    $region9: #{neuralnet_forward.5} parent=5 // pred_check
      _
    $region10: #{neuralnet_forward.5} parent=5 // pred_check_branch
      %116 = sbr.rel (%p113) target = $region12
    $region11: #{neuralnet_forward.5} parent=5 // pred_region
      %s117 = ssub.s32 %s9, 1
      // Predicated region
      $region13: #{neuralnet_forward.5} parent=11 // pred_check
        %p118 = pneg %p56
      $region14: #{neuralnet_forward.5} parent=11 // pred_check_branch
        %120 = sbr.rel (%p118) target = $region16
      $region15: #{neuralnet_forward.5} parent=11 // pred_region
        _
      $region16: #{neuralnet_forward.5} parent=11 // pred_fallthru
        _
      // Predicated region
      $region17: #{neuralnet_forward.5} parent=11 // pred_check
        %p121 = pneg %p77
      $region18: #{neuralnet_forward.5} parent=11 // pred_check_branch
        %123 = sbr.rel (%p121) target = $region20
      $region19: #{neuralnet_forward.5} parent=11 // pred_region
        _
      $region20: #{neuralnet_forward.5} parent=11 // pred_fallthru
        _
    $region12: #{neuralnet_forward.5} parent=5 // pred_fallthru
      _
    %p124 = scmp.lt.s32.totalorder %s9, 2
    // Predicated region
    $region21: #{neuralnet_forward.5} parent=5 // pred_check
      %p125 = pneg %p124
    $region22: #{neuralnet_forward.5} parent=5 // pred_check_branch
      %127 = sbr.rel (%p125) target = $region24
    $region23: #{neuralnet_forward.5} parent=5 // pred_region
      // Predicated region
      $region25: #{neuralnet_forward.5} parent=23 // pred_check
        %p128 = pneg %p29
      $region26: #{neuralnet_forward.5} parent=23 // pred_check_branch
        %130 = sbr.rel (%p128) target = $region28
      $region27: #{neuralnet_forward.5} parent=23 // pred_region
        %s131 = smul.u32 8, %s9
        %p132 = scmp.lt.s32.totalorder %s131, 15
        %s133 = scalar_select %p132, %s131, 15
        %s134 = smul.addr %s133, 8
        %s135 = scalar_lea.vmem %s0, %s134
        %s136 = smul.u32 8, %s9
      $region28: #{neuralnet_forward.5} parent=23 // pred_fallthru
        _
    $region24: #{neuralnet_forward.5} parent=5 // pred_fallthru
      _
    %p137 = scmp.le.s32.totalorder 1, %s9
    %p138 = scmp.lt.s32.totalorder %s9, 3
    %p139 = pnand %p137, %p138
    %p140 = pneg %p139
    // Predicated region
    $region29: #{neuralnet_forward.5} parent=5 // pred_check
      _
    $region30: #{neuralnet_forward.5} parent=5 // pred_check_branch
      %142 = sbr.rel (%p139) target = $region32
    $region31: #{neuralnet_forward.5} parent=5 // pred_region
      %s143 = ssub.s32 %s9, 1
      %s144 = smul.u32 8, %s14
      %p145 = scmp.lt.s32.totalorder %s144, 15
      %s146 = scalar_select %p145, %s144, 15
      %s147 = smul.addr %s146, 8
      %s148 = scalar_lea.vmem %s0, %s147
      %p149 = pneg %p35
      %p150 = pneg %p32
      %p151 = pneg %p56
      %p152 = pneg %p53
      %p153 = pneg %p77
      %p154 = pneg %p74
      %p155 = pneg %p103
      %p156 = pneg %p100
      %s157 = smul.u32 8, %s14
      %p158 = scmp.lt.s32.totalorder %s157, 15
      %s159 = scalar_select %p158, %s157, 15
      %s160 = smul.addr %s159, 8
      %s161 = scalar_lea.vmem %s3, %s160
      %s162 = smul.u32 8, %s14
      %p163 = scmp.lt.s32.totalorder %s162, 15
      %s164 = scalar_select %p163, %s162, 15
      %s165 = smul.addr %s164, 8
      %s166 = scalar_lea.vmem %s0, %s165
      %s167 = smul.u32 8, %s14
      %s168 = smul.u32 8, %s14
      %p169 = scmp.lt.s32.totalorder %s168, 15
      %s170 = scalar_select %p169, %s168, 15
      %s171 = smul.addr %s170, 8
      %s172 = scalar_lea.vmem %s3, %s171
      %s173 = smul.u32 8, %s14
      %v174 = vld [vmem:[%s166] sm:$0xff]
      %v175 = vld [vmem:[%s166 + $0x8] sm:$0xff]
      %v176 = vld [vmem:[%s166 + $0x10] sm:$0xff]
      %v177 = vld [vmem:[%s166 + $0x18] sm:$0xff]
      %v178 = vld [vmem:[%s166 + $0x20] sm:$0xff]
      %v179 = vld [vmem:[%s166 + $0x28] sm:$0xff]
      %v180 = vld [vmem:[%s166 + $0x30] sm:$0xff]
      %v181 = vld [vmem:[%s166 + $0x38] sm:$0xff]
      %v182 = vld [vmem:[%s1] sm:$0x1]
      %v184 = vlaneseq
      %v185 = vshrl.u32 %v184, 7
      %v186 = vsub.s32 0, %v185
      %v187 = vrot.slane %v182, %v186
      %v189 = vmul.f32 %v174, %v187
      %v190 = vmul.f32 %v175, %v187
      %v191 = vmul.f32 %v176, %v187
      %v192 = vmul.f32 %v177, %v187
      %v193 = vmul.f32 %v178, %v187
      %v194 = vmul.f32 %v179, %v187
      %v195 = vmul.f32 %v180, %v187
      %v196 = vmul.f32 %v181, %v187
      %v197 = vld [vmem:[%s2] sm:$0x1]
      %v199 = vlaneseq
      %v200 = vshrl.u32 %v199, 7
      %v201 = vsub.s32 0, %v200
      %v202 = vrot.slane %v197, %v201
      %v204 = vadd.f32 %v189, %v202
      %v205 = vadd.f32 %v190, %v202
      %v206 = vadd.f32 %v191, %v202
      %v207 = vadd.f32 %v192, %v202
      %v208 = vadd.f32 %v193, %v202
      %v209 = vadd.f32 %v194, %v202
      %v210 = vadd.f32 %v195, %v202
      %v211 = vadd.f32 %v196, %v202
      %vm212 = vcmp.gt.f32.partialorder %v204, 0.0
      %vm213 = vcmp.gt.f32.partialorder %v205, 0.0
      %vm214 = vcmp.gt.f32.partialorder %v206, 0.0
      %vm215 = vcmp.gt.f32.partialorder %v207, 0.0
      %vm216 = vcmp.gt.f32.partialorder %v208, 0.0
      %vm217 = vcmp.gt.f32.partialorder %v209, 0.0
      %vm218 = vcmp.gt.f32.partialorder %v210, 0.0
      %vm219 = vcmp.gt.f32.partialorder %v211, 0.0
      %v220 = vmul.f32 %v204, 0.01
      %v221 = vmul.f32 %v205, 0.01
      %v222 = vmul.f32 %v206, 0.01
      %v223 = vmul.f32 %v207, 0.01
      %v224 = vmul.f32 %v208, 0.01
      %v225 = vmul.f32 %v209, 0.01
      %v226 = vmul.f32 %v210, 0.01
      %v227 = vmul.f32 %v211, 0.01
      %v228 = vsel %vm212, %v204, %v220
      %v229 = vsel %vm213, %v205, %v221
      %v230 = vsel %vm214, %v206, %v222
      %v231 = vsel %vm215, %v207, %v223
      %v232 = vsel %vm216, %v208, %v224
      %v233 = vsel %vm217, %v209, %v225
      %v234 = vsel %vm218, %v210, %v226
      %v235 = vsel %vm219, %v211, %v227
      %236 = vst [vmem:[%s172] sm:$0xff] %v228
      %237 = vst [vmem:[%s172 + $0x8] sm:$0xff] %v229
      %238 = vst [vmem:[%s172 + $0x10] sm:$0xff] %v230
      %239 = vst [vmem:[%s172 + $0x18] sm:$0xff] %v231
      %240 = vst [vmem:[%s172 + $0x20] sm:$0xff] %v232
      %241 = vst [vmem:[%s172 + $0x28] sm:$0xff] %v233
      %242 = vst [vmem:[%s172 + $0x30] sm:$0xff] %v234
      %243 = vst [vmem:[%s172 + $0x38] sm:$0xff] %v235
      %s244 = smul.u32 8, %s14
      %p245 = scmp.lt.s32.totalorder %s244, 15
      %s246 = scalar_select %p245, %s244, 15
      %s247 = smul.addr %s246, 8
      %s248 = scalar_lea.vmem %s3, %s247
      // Predicated region
      $region33: #{neuralnet_forward.5} parent=31 // pred_check
        %p249 = pneg %p100
      $region34: #{neuralnet_forward.5} parent=31 // pred_check_branch
        %251 = sbr.rel (%p249) target = $region36
      $region35: #{neuralnet_forward.5} parent=31 // pred_region
        %s252 = smul.u32 8, %s14
      $region36: #{neuralnet_forward.5} parent=31 // pred_fallthru
        _
    $region32: #{neuralnet_forward.5} parent=5 // pred_fallthru
      _
    %p253 = scmp.le.s32.totalorder 2, %s9
    // Predicated region
    $region37: #{neuralnet_forward.5} parent=5 // pred_check
      %p254 = pneg %p253
    $region38: #{neuralnet_forward.5} parent=5 // pred_check_branch
      %256 = sbr.rel (%p254) target = $region40
    $region39: #{neuralnet_forward.5} parent=5 // pred_region
      %s257 = ssub.s32 %s9, 2
      // Predicated region
      $region41: #{neuralnet_forward.5} parent=39 // pred_check
        %p258 = pneg %p106
      $region42: #{neuralnet_forward.5} parent=39 // pred_check_branch
        %260 = sbr.rel (%p258) target = $region44
      $region43: #{neuralnet_forward.5} parent=39 // pred_region
        %s261 = smul.u32 8, %s15
        %p262 = scmp.lt.s32.totalorder %s261, 15
        %s263 = scalar_select %p262, %s261, 15
        %s264 = smul.addr %s263, 8
        %s265 = scalar_lea.vmem %s3, %s264
      $region44: #{neuralnet_forward.5} parent=39 // pred_fallthru
        _
    $region40: #{neuralnet_forward.5} parent=5 // pred_fallthru
      _
  $region6: #{neuralnet_forward.5} parent=0 // loop_footer
    %s13 = sadd.s32 1, %s9
  $region7: #{neuralnet_forward.5} parent=0 // loop_footer_branch
    %8 = sbr.rel target = $region3
  $region8: #{neuralnet_forward.5} parent=0 // loop_exit
    _

// kernel: neuralnet_forward.4
$region0: #{neuralnet_forward.4}
  #allocation0 [shape = 'u32[]', space=smem, size = 0x4, offset = 0x4, fixed_abs, tag = 'smem constant byte address 0x4 - core index']
  #allocation1 [shape = 'u32[144,128]{1,0:T(1,128)}', space=vmem, size = 0x12000, scoped, tag = 'internal scratch']
  %s0 = inlined_call_operand.vmem [shape: f32[128,256], index: 0, kind: input, shape index: {}]
  %s1 = inlined_call_operand.vmem [shape: f32[1,256], index: 1, kind: input, shape index: {}]
  %s2 = inlined_call_operand.vmem [shape: f32[1,256], index: 2, kind: input, shape index: {}]
  %s3 = inlined_call_operand.vmem [shape: f32[256,128], index: 3, kind: input, shape index: {}]
  %s4 = inlined_call_operand.vmem [shape: f32[1,128], index: 4, kind: input, shape index: {}]
  %s5 = inlined_call_operand.vmem [shape: f32[128,128], index: 5, kind: output, shape index: {0}]
  %s6 = inlined_call_operand.vmem [shape: f32[2,8,128], index: 6, kind: output, shape index: {1}]
  %7 = xla_tuple %s5, %s6
  %s8 = sld [smem:[#allocation0]]
  $region61: #{neuralnet_forward.4} parent=0
    _
  %s10 = ssub.s32 1, %s8
  %s11 = scalar_select 0, %s10, %s8
  loop: start=0, step=1, limit=4
  $region2: #{neuralnet_forward.4} parent=0 // loop_pre_header
    _
  $region3: #{neuralnet_forward.4} parent=0 // loop_header
    %s13 = sphi 0, %s17
    %p14 = scmp.ge.s32.totalorder %s13, 4
    %s23 = sphi 0, %s25
    %s26 = sphi 0, %s23
    %s27 = sphi 0, %s26
    %s43 = sphi 0, %s27
    %s47 = sphi 0, %s47
    %s49 = sphi 0, %s47
    %s50 = sphi 0, %s49
    %s64 = sphi 0, %s50
    %s68 = sphi 0, %s68
    %s70 = sphi 0, %s68
    %s71 = sphi 0, %s70
    %s85 = sphi 0, %s71
    %s89 = sphi 0, %s89
    %s91 = sphi 0, %s89
    %s92 = sphi 0, %s91
    %s106 = sphi 0, %s92
    %s110 = sphi 0, %s110
    %s112 = sphi 0, %s110
    %s113 = sphi 0, %s112
    %s127 = sphi 0, %s113
    %s133 = sphi 0, %s135
    %s136 = sphi 0, %s133
    %s137 = sphi 0, %s136
    %s153 = sphi 0, %s137
    %s159 = sphi 0, %s161
    %s162 = sphi 0, %s159
    %s163 = sphi 0, %s162
    %s179 = sphi 0, %s163
  $region4: #{neuralnet_forward.4} parent=0 // loop_header_branch
    %16 = sbr.rel (%p14) target = $region8
  $region5: #{neuralnet_forward.4} parent=0 // loop_body
    %s18 = ssub.s32 %s13, 1
    %s19 = ssub.s32 %s13, 2
    %s20 = sadd.s32 %s13, 1
    %s21 = ssub.s32 %s13, %s20
    %p22 = scmp.eq.s32.totalorder %s21, 0
    %s24 = sadd.s32 %s23, 1
    %s25 = scalar_select %p22, %s23, %s24
    %p28 = pneg %p22
    %p29 = scmp.eq.s32.totalorder %s13, 1
    %p30 = por %p28, %p29
    %p31 = scmp.ne.s32.totalorder %s23, %s26
    %p32 = scmp.eq.s32.totalorder %s13, 0
    %p33 = por %p31, %p32
    %p34 = scmp.ne.s32.totalorder %s23, %s26
    %p35 = scmp.eq.s32.totalorder %s18, 1
    %p36 = por %p34, %p35
    %p37 = scmp.ne.s32.totalorder %s26, %s27
    %p38 = scmp.eq.s32.totalorder %s18, 0
    %p39 = por %p37, %p38
    %p40 = scmp.ne.s32.totalorder %s26, %s27
    %p41 = scmp.eq.s32.totalorder %s19, 1
    %p42 = por %p40, %p41
    %p44 = scmp.ne.s32.totalorder %s27, %s43
    %p45 = scmp.eq.s32.totalorder %s19, 0
    %p46 = por %p44, %p45
    %s48 = sadd.s32 %s47, 1
    %p51 = scmp.eq.s32.totalorder %s13, 1
    %p52 = scmp.ne.s32.totalorder %s47, %s49
    %p53 = scmp.eq.s32.totalorder %s13, 0
    %p54 = por %p52, %p53
    %p55 = scmp.ne.s32.totalorder %s47, %s49
    %p56 = scmp.eq.s32.totalorder %s18, 1
    %p57 = por %p55, %p56
    %p58 = scmp.ne.s32.totalorder %s49, %s50
    %p59 = scmp.eq.s32.totalorder %s18, 0
    %p60 = por %p58, %p59
    %p61 = scmp.ne.s32.totalorder %s49, %s50
    %p62 = scmp.eq.s32.totalorder %s19, 1
    %p63 = por %p61, %p62
    %p65 = scmp.ne.s32.totalorder %s50, %s64
    %p66 = scmp.eq.s32.totalorder %s19, 0
    %p67 = por %p65, %p66
    %s69 = sadd.s32 %s68, 1
    %p72 = scmp.eq.s32.totalorder %s13, 1
    %p73 = scmp.ne.s32.totalorder %s68, %s70
    %p74 = scmp.eq.s32.totalorder %s13, 0
    %p75 = por %p73, %p74
    %p76 = scmp.ne.s32.totalorder %s68, %s70
    %p77 = scmp.eq.s32.totalorder %s18, 1
    %p78 = por %p76, %p77
    %p79 = scmp.ne.s32.totalorder %s70, %s71
    %p80 = scmp.eq.s32.totalorder %s18, 0
    %p81 = por %p79, %p80
    %p82 = scmp.ne.s32.totalorder %s70, %s71
    %p83 = scmp.eq.s32.totalorder %s19, 1
    %p84 = por %p82, %p83
    %p86 = scmp.ne.s32.totalorder %s71, %s85
    %p87 = scmp.eq.s32.totalorder %s19, 0
    %p88 = por %p86, %p87
    %s90 = sadd.s32 %s89, 1
    %p93 = scmp.eq.s32.totalorder %s13, 1
    %p94 = scmp.ne.s32.totalorder %s89, %s91
    %p95 = scmp.eq.s32.totalorder %s13, 0
    %p96 = por %p94, %p95
    %p97 = scmp.ne.s32.totalorder %s89, %s91
    %p98 = scmp.eq.s32.totalorder %s18, 1
    %p99 = por %p97, %p98
    %p100 = scmp.ne.s32.totalorder %s91, %s92
    %p101 = scmp.eq.s32.totalorder %s18, 0
    %p102 = por %p100, %p101
    %p103 = scmp.ne.s32.totalorder %s91, %s92
    %p104 = scmp.eq.s32.totalorder %s19, 1
    %p105 = por %p103, %p104
    %p107 = scmp.ne.s32.totalorder %s92, %s106
    %p108 = scmp.eq.s32.totalorder %s19, 0
    %p109 = por %p107, %p108
    %s111 = sadd.s32 %s110, 1
    %p114 = scmp.eq.s32.totalorder %s13, 1
    %p115 = scmp.ne.s32.totalorder %s110, %s112
    %p116 = scmp.eq.s32.totalorder %s13, 0
    %p117 = por %p115, %p116
    %p118 = scmp.ne.s32.totalorder %s110, %s112
    %p119 = scmp.eq.s32.totalorder %s18, 1
    %p120 = por %p118, %p119
    %p121 = scmp.ne.s32.totalorder %s112, %s113
    %p122 = scmp.eq.s32.totalorder %s18, 0
    %p123 = por %p121, %p122
    %p124 = scmp.ne.s32.totalorder %s112, %s113
    %p125 = scmp.eq.s32.totalorder %s19, 1
    %p126 = por %p124, %p125
    %p128 = scmp.ne.s32.totalorder %s113, %s127
    %p129 = scmp.eq.s32.totalorder %s19, 0
    %p130 = por %p128, %p129
    %s131 = ssub.s32 %s13, %s20
    %p132 = scmp.eq.s32.totalorder %s131, 0
    %s134 = sadd.s32 %s133, 1
    %s135 = scalar_select %p132, %s133, %s134
    %p138 = pneg %p132
    %p139 = scmp.eq.s32.totalorder %s13, 1
    %p140 = por %p138, %p139
    %p141 = scmp.ne.s32.totalorder %s133, %s136
    %p142 = scmp.eq.s32.totalorder %s13, 0
    %p143 = por %p141, %p142
    %p144 = scmp.ne.s32.totalorder %s133, %s136
    %p145 = scmp.eq.s32.totalorder %s18, 1
    %p146 = por %p144, %p145
    %p147 = scmp.ne.s32.totalorder %s136, %s137
    %p148 = scmp.eq.s32.totalorder %s18, 0
    %p149 = por %p147, %p148
    %p150 = scmp.ne.s32.totalorder %s136, %s137
    %p151 = scmp.eq.s32.totalorder %s19, 1
    %p152 = por %p150, %p151
    %p154 = scmp.ne.s32.totalorder %s137, %s153
    %p155 = scmp.eq.s32.totalorder %s19, 0
    %p156 = por %p154, %p155
    %s157 = ssub.s32 %s13, %s20
    %p158 = scmp.eq.s32.totalorder %s157, 0
    %s160 = sadd.s32 %s159, 1
    %s161 = scalar_select %p158, %s159, %s160
    %p164 = pneg %p158
    %p165 = scmp.eq.s32.totalorder %s13, 1
    %p166 = por %p164, %p165
    %p167 = scmp.ne.s32.totalorder %s159, %s162
    %p168 = scmp.eq.s32.totalorder %s13, 0
    %p169 = por %p167, %p168
    %p170 = scmp.ne.s32.totalorder %s159, %s162
    %p171 = scmp.eq.s32.totalorder %s18, 1
    %p172 = por %p170, %p171
    %p173 = scmp.ne.s32.totalorder %s162, %s163
    %p174 = scmp.eq.s32.totalorder %s18, 0
    %p175 = por %p173, %p174
    %p176 = scmp.ne.s32.totalorder %s162, %s163
    %p177 = scmp.eq.s32.totalorder %s19, 1
    %p178 = por %p176, %p177
    %p180 = scmp.ne.s32.totalorder %s163, %s179
    %p181 = scmp.eq.s32.totalorder %s19, 0
    %p182 = por %p180, %p181
    %p183 = scmp.le.s32.totalorder 1, %s13
    %p184 = scmp.lt.s32.totalorder %s13, 3
    %p185 = pnand %p183, %p184
    %p186 = pneg %p185
    // Predicated region
    $region9: #{neuralnet_forward.4} parent=5 // pred_check
      _
    $region10: #{neuralnet_forward.4} parent=5 // pred_check_branch
      %188 = sbr.rel (%p185) target = $region12
    $region11: #{neuralnet_forward.4} parent=5 // pred_region
      %s189 = ssub.s32 %s13, 1
      // Predicated region
      $region13: #{neuralnet_forward.4} parent=11 // pred_check
        %p190 = pneg %p60
      $region14: #{neuralnet_forward.4} parent=11 // pred_check_branch
        %192 = sbr.rel (%p190) target = $region16
      $region15: #{neuralnet_forward.4} parent=11 // pred_region
        _
      $region16: #{neuralnet_forward.4} parent=11 // pred_fallthru
        _
      // Predicated region
      $region17: #{neuralnet_forward.4} parent=11 // pred_check
        %p193 = pneg %p81
      $region18: #{neuralnet_forward.4} parent=11 // pred_check_branch
        %195 = sbr.rel (%p193) target = $region20
      $region19: #{neuralnet_forward.4} parent=11 // pred_region
        _
      $region20: #{neuralnet_forward.4} parent=11 // pred_fallthru
        _
      // Predicated region
      $region21: #{neuralnet_forward.4} parent=11 // pred_check
        %p196 = pneg %p102
      $region22: #{neuralnet_forward.4} parent=11 // pred_check_branch
        %198 = sbr.rel (%p196) target = $region24
      $region23: #{neuralnet_forward.4} parent=11 // pred_region
        _
      $region24: #{neuralnet_forward.4} parent=11 // pred_fallthru
        _
      // Predicated region
      $region25: #{neuralnet_forward.4} parent=11 // pred_check
        %p199 = pneg %p123
      $region26: #{neuralnet_forward.4} parent=11 // pred_check_branch
        %201 = sbr.rel (%p199) target = $region28
      $region27: #{neuralnet_forward.4} parent=11 // pred_region
        _
      $region28: #{neuralnet_forward.4} parent=11 // pred_fallthru
        _
    $region12: #{neuralnet_forward.4} parent=5 // pred_fallthru
      _
    %p202 = scmp.lt.s32.totalorder %s13, 2
    // Predicated region
    $region29: #{neuralnet_forward.4} parent=5 // pred_check
      %p203 = pneg %p202
    $region30: #{neuralnet_forward.4} parent=5 // pred_check_branch
      %205 = sbr.rel (%p203) target = $region32
    $region31: #{neuralnet_forward.4} parent=5 // pred_region
      // Predicated region
      $region33: #{neuralnet_forward.4} parent=31 // pred_check
        %p206 = pneg %p33
      $region34: #{neuralnet_forward.4} parent=31 // pred_check_branch
        %208 = sbr.rel (%p206) target = $region36
      $region35: #{neuralnet_forward.4} parent=31 // pred_region
        %s209 = smul.u32 8, %s13
        %p210 = scmp.lt.s32.totalorder %s209, 15
        %s211 = scalar_select %p210, %s209, 15
        %s212 = smul.addr %s211, 2
        %s213 = smul.addr %s212, 8
        %s214 = scalar_lea.vmem %s0, %s213
        %s215 = smul.u32 8, %s13
      $region36: #{neuralnet_forward.4} parent=31 // pred_fallthru
        _
    $region32: #{neuralnet_forward.4} parent=5 // pred_fallthru
      _
    %p216 = scmp.le.s32.totalorder 1, %s13
    %p217 = scmp.lt.s32.totalorder %s13, 3
    %p218 = pnand %p216, %p217
    %p219 = pneg %p218
    // Predicated region
    $region37: #{neuralnet_forward.4} parent=5 // pred_check
      _
    $region38: #{neuralnet_forward.4} parent=5 // pred_check_branch
      %221 = sbr.rel (%p218) target = $region40
    $region39: #{neuralnet_forward.4} parent=5 // pred_region
      %s222 = ssub.s32 %s13, 1
      %s223 = smul.u32 8, %s18
      %p224 = scmp.lt.s32.totalorder %s223, 15
      %s225 = scalar_select %p224, %s223, 15
      %s226 = smul.addr %s225, 2
      %s227 = smul.addr %s226, 8
      %s228 = scalar_lea.vmem %s0, %s227
      %p229 = pneg %p39
      %p230 = pneg %p36
      %p231 = pneg %p60
      %p232 = pneg %p57
      %p233 = pneg %p81
      %p234 = pneg %p78
      %p235 = pneg %p102
      %p236 = pneg %p99
      %p237 = pneg %p123
      %p238 = pneg %p120
      %p239 = pneg %p149
      %p240 = pneg %p146
      %s241 = smul.u32 8, %s18
      %p242 = scmp.lt.s32.totalorder %s241, 15
      %s243 = scalar_select %p242, %s241, 15
      %s244 = smul.addr %s243, 8
      %s245 = scalar_lea.vmem %s5, %s244
      %p246 = pneg %p175
      %p247 = pneg %p172
      %p248 = scmp.lt.s32.totalorder %s18, 1
      %s249 = scalar_select %p248, %s18, 1
      %s250 = smul.addr %s249, 8
      %s251 = scalar_lea.vmem %s6, %s250
      %s252 = smul.u32 8, %s18
      %p253 = scmp.lt.s32.totalorder %s252, 15
      %s254 = scalar_select %p253, %s252, 15
      %s255 = smul.addr %s254, 2
      %s256 = smul.addr %s255, 8
      %s257 = scalar_lea.vmem %s0, %s256
      %s258 = smul.u32 8, %s18
      %s259 = smul.u32 8, %s18
      %p260 = scmp.lt.s32.totalorder %s259, 15
      %s261 = scalar_select %p260, %s259, 15
      %s262 = smul.addr %s261, 8
      %s263 = scalar_lea.vmem %s5, %s262
      %s264 = smul.u32 8, %s18
      %p265 = scmp.lt.s32.totalorder %s18, 1
      %s266 = scalar_select %p265, %s18, 1
      %s267 = smul.addr %s266, 8
      %s268 = scalar_lea.vmem %s6, %s267
      %v269 = vld [vmem:[%s257] sm:$0xff]
      %v270 = vld [vmem:[%s257 + $0x8] sm:$0xff]
      %v271 = vld [vmem:[%s257 + $0x10] sm:$0xff]
      %v272 = vld [vmem:[%s257 + $0x18] sm:$0xff]
      %v273 = vld [vmem:[%s257 + $0x20] sm:$0xff]
      %v274 = vld [vmem:[%s257 + $0x28] sm:$0xff]
      %v275 = vld [vmem:[%s257 + $0x30] sm:$0xff]
      %v276 = vld [vmem:[%s257 + $0x38] sm:$0xff]
      %v277 = vld [vmem:[%s257 + $0x40] sm:$0xff]
      %v278 = vld [vmem:[%s257 + $0x48] sm:$0xff]
      %v279 = vld [vmem:[%s257 + $0x50] sm:$0xff]
      %v280 = vld [vmem:[%s257 + $0x58] sm:$0xff]
      %v281 = vld [vmem:[%s257 + $0x60] sm:$0xff]
      %v282 = vld [vmem:[%s257 + $0x68] sm:$0xff]
      %v283 = vld [vmem:[%s257 + $0x70] sm:$0xff]
      %v284 = vld [vmem:[%s257 + $0x78] sm:$0xff]
      %v285 = vld [vmem:[%s1] sm:$0x3]
      %v287 = vlaneseq
      %v288 = vshrl.u32 %v287, 7
      %v289 = vsub.s32 0, %v288
      %v290 = vrot.slane %v285, %v289
      %v291 = vlaneseq
      %v292 = vshrl.u32 %v291, 7
      %v293 = vsub.s32 1, %v292
      %v294 = vrot.slane %v285, %v293
      %v297 = vmul.f32 %v269, %v290
      %v298 = vmul.f32 %v270, %v294
      %v299 = vmul.f32 %v271, %v290
      %v300 = vmul.f32 %v272, %v294
      %v301 = vmul.f32 %v273, %v290
      %v302 = vmul.f32 %v274, %v294
      %v303 = vmul.f32 %v275, %v290
      %v304 = vmul.f32 %v276, %v294
      %v305 = vmul.f32 %v277, %v290
      %v306 = vmul.f32 %v278, %v294
      %v307 = vmul.f32 %v279, %v290
      %v308 = vmul.f32 %v280, %v294
      %v309 = vmul.f32 %v281, %v290
      %v310 = vmul.f32 %v282, %v294
      %v311 = vmul.f32 %v283, %v290
      %v312 = vmul.f32 %v284, %v294
      %v313 = vld [vmem:[%s2] sm:$0x3]
      %v315 = vlaneseq
      %v316 = vshrl.u32 %v315, 7
      %v317 = vsub.s32 0, %v316
      %v318 = vrot.slane %v313, %v317
      %v319 = vlaneseq
      %v320 = vshrl.u32 %v319, 7
      %v321 = vsub.s32 1, %v320
      %v322 = vrot.slane %v313, %v321
      %v325 = vadd.f32 %v297, %v318
      %v326 = vadd.f32 %v298, %v322
      %v327 = vadd.f32 %v299, %v318
      %v328 = vadd.f32 %v300, %v322
      %v329 = vadd.f32 %v301, %v318
      %v330 = vadd.f32 %v302, %v322
      %v331 = vadd.f32 %v303, %v318
      %v332 = vadd.f32 %v304, %v322
      %v333 = vadd.f32 %v305, %v318
      %v334 = vadd.f32 %v306, %v322
      %v335 = vadd.f32 %v307, %v318
      %v336 = vadd.f32 %v308, %v322
      %v337 = vadd.f32 %v309, %v318
      %v338 = vadd.f32 %v310, %v322
      %v339 = vadd.f32 %v311, %v318
      %v340 = vadd.f32 %v312, %v322
      %vm341 = vcmp.gt.f32.partialorder %v325, 0.0
      %vm342 = vcmp.gt.f32.partialorder %v326, 0.0
      %vm343 = vcmp.gt.f32.partialorder %v327, 0.0
      %vm344 = vcmp.gt.f32.partialorder %v328, 0.0
      %vm345 = vcmp.gt.f32.partialorder %v329, 0.0
      %vm346 = vcmp.gt.f32.partialorder %v330, 0.0
      %vm347 = vcmp.gt.f32.partialorder %v331, 0.0
      %vm348 = vcmp.gt.f32.partialorder %v332, 0.0
      %vm349 = vcmp.gt.f32.partialorder %v333, 0.0
      %vm350 = vcmp.gt.f32.partialorder %v334, 0.0
      %vm351 = vcmp.gt.f32.partialorder %v335, 0.0
      %vm352 = vcmp.gt.f32.partialorder %v336, 0.0
      %vm353 = vcmp.gt.f32.partialorder %v337, 0.0
      %vm354 = vcmp.gt.f32.partialorder %v338, 0.0
      %vm355 = vcmp.gt.f32.partialorder %v339, 0.0
      %vm356 = vcmp.gt.f32.partialorder %v340, 0.0
      %v357 = vmul.f32 %v325, 0.01
      %v358 = vmul.f32 %v326, 0.01
      %v359 = vmul.f32 %v327, 0.01
      %v360 = vmul.f32 %v328, 0.01
      %v361 = vmul.f32 %v329, 0.01
      %v362 = vmul.f32 %v330, 0.01
      %v363 = vmul.f32 %v331, 0.01
      %v364 = vmul.f32 %v332, 0.01
      %v365 = vmul.f32 %v333, 0.01
      %v366 = vmul.f32 %v334, 0.01
      %v367 = vmul.f32 %v335, 0.01
      %v368 = vmul.f32 %v336, 0.01
      %v369 = vmul.f32 %v337, 0.01
      %v370 = vmul.f32 %v338, 0.01
      %v371 = vmul.f32 %v339, 0.01
      %v372 = vmul.f32 %v340, 0.01
      %v373 = vsel %vm341, %v325, %v357
      %v374 = vsel %vm342, %v326, %v358
      %v375 = vsel %vm343, %v327, %v359
      %v376 = vsel %vm344, %v328, %v360
      %v377 = vsel %vm345, %v329, %v361
      %v378 = vsel %vm346, %v330, %v362
      %v379 = vsel %vm347, %v331, %v363
      %v380 = vsel %vm348, %v332, %v364
      %v381 = vsel %vm349, %v333, %v365
      %v382 = vsel %vm350, %v334, %v366
      %v383 = vsel %vm351, %v335, %v367
      %v384 = vsel %vm352, %v336, %v368
      %v385 = vsel %vm353, %v337, %v369
      %v386 = vsel %vm354, %v338, %v370
      %v387 = vsel %vm355, %v339, %v371
      %v388 = vsel %vm356, %v340, %v372
      %v389 = vld [vmem:[%s3] sm:$0xff]
      %v390 = vld [vmem:[%s3 + $0x8] sm:$0xff]
      %v391 = vld [vmem:[%s3 + $0x10] sm:$0xff]
      %v392 = vld [vmem:[%s3 + $0x18] sm:$0xff]
      %v393 = vld [vmem:[%s3 + $0x20] sm:$0xff]
      %v394 = vld [vmem:[%s3 + $0x28] sm:$0xff]
      %v395 = vld [vmem:[%s3 + $0x30] sm:$0xff]
      %v396 = vld [vmem:[%s3 + $0x38] sm:$0xff]
      %v397 = vld [vmem:[%s3 + $0x40] sm:$0xff]
      %v398 = vld [vmem:[%s3 + $0x48] sm:$0xff]
      %v399 = vld [vmem:[%s3 + $0x50] sm:$0xff]
      %v400 = vld [vmem:[%s3 + $0x58] sm:$0xff]
      %v401 = vld [vmem:[%s3 + $0x60] sm:$0xff]
      %v402 = vld [vmem:[%s3 + $0x68] sm:$0xff]
      %v403 = vld [vmem:[%s3 + $0x70] sm:$0xff]
      %v404 = vld [vmem:[%s3 + $0x78] sm:$0xff]
      %v405 = vld [vmem:[%s3 + $0x80] sm:$0xff]
      %v406 = vld [vmem:[%s3 + $0x88] sm:$0xff]
      %v407 = vld [vmem:[%s3 + $0x90] sm:$0xff]
      %v408 = vld [vmem:[%s3 + $0x98] sm:$0xff]
      %v409 = vld [vmem:[%s3 + $0xa0] sm:$0xff]
      %v410 = vld [vmem:[%s3 + $0xa8] sm:$0xff]
      %v411 = vld [vmem:[%s3 + $0xb0] sm:$0xff]
      %v412 = vld [vmem:[%s3 + $0xb8] sm:$0xff]
      %v413 = vld [vmem:[%s3 + $0xc0] sm:$0xff]
      %v414 = vld [vmem:[%s3 + $0xc8] sm:$0xff]
      %v415 = vld [vmem:[%s3 + $0xd0] sm:$0xff]
      %v416 = vld [vmem:[%s3 + $0xd8] sm:$0xff]
      %v417 = vld [vmem:[%s3 + $0xe0] sm:$0xff]
      %v418 = vld [vmem:[%s3 + $0xe8] sm:$0xff]
      %v419 = vld [vmem:[%s3 + $0xf0] sm:$0xff]
      %v420 = vld [vmem:[%s3 + $0xf8] sm:$0xff]
      %v421 = vld [vmem:[%s4] sm:$0x1]
      %v423 = vlaneseq
      %v424 = vshrl.u32 %v423, 7
      %v425 = vsub.s32 0, %v424
      %v426 = vrot.slane %v421, %v425
      %428 = vmatprep.subr.mxu0 0.0
      %429 = vmatpush1.msra.mxu0 %v389
      %430 = vmatprep.subr.mxu0 0.0
      %431 = vmatpush1.msra.mxu0 %v390
      %432 = vmatprep.subr.mxu0 0.0
      %433 = vmatpush1.msra.mxu0 %v391
      %434 = vmatprep.subr.mxu0 0.0
      %435 = vmatpush1.msra.mxu0 %v392
      %436 = vmatprep.subr.mxu0 0.0
      %437 = vmatpush1.msra.mxu0 %v393
      %438 = vmatprep.subr.mxu0 0.0
      %439 = vmatpush1.msra.mxu0 %v394
      %440 = vmatprep.subr.mxu0 0.0
      %441 = vmatpush1.msra.mxu0 %v395
      %442 = vmatprep.subr.mxu0 0.0
      %443 = vmatpush1.msra.mxu0 %v396
      %444 = vmatprep.subr.mxu0 0.0
      %445 = vmatpush1.msra.mxu0 %v397
      %446 = vmatprep.subr.mxu0 0.0
      %447 = vmatpush1.msra.mxu0 %v398
      %448 = vmatprep.subr.mxu0 0.0
      %449 = vmatpush1.msra.mxu0 %v399
      %450 = vmatprep.subr.mxu0 0.0
      %451 = vmatpush1.msra.mxu0 %v400
      %452 = vmatprep.subr.mxu0 0.0
      %453 = vmatpush1.msra.mxu0 %v401
      %454 = vmatprep.subr.mxu0 0.0
      %455 = vmatpush1.msra.mxu0 %v402
      %456 = vmatprep.subr.mxu0 0.0
      %457 = vmatpush1.msra.mxu0 %v403
      %458 = vmatprep.subr.mxu0 0.0
      %459 = vmatpush1.msra.mxu0 %v404
      %460 = vmatprep.subr.mxu0 0.0
      %461 = vmatpush1.msra.mxu0 %v405
      %462 = vmatprep.subr.mxu0 0.0
      %463 = vmatpush1.msra.mxu0 %v406
      %464 = vmatprep.subr.mxu0 0.0
      %465 = vmatpush1.msra.mxu0 %v407
      %466 = vmatprep.subr.mxu0 0.0
      %467 = vmatpush1.msra.mxu0 %v408
      %468 = vmatprep.subr.mxu0 0.0
      %469 = vmatpush1.msra.mxu0 %v409
      %470 = vmatprep.subr.mxu0 0.0
      %471 = vmatpush1.msra.mxu0 %v410
      %472 = vmatprep.subr.mxu0 0.0
      %473 = vmatpush1.msra.mxu0 %v411
      %474 = vmatprep.subr.mxu0 0.0
      %475 = vmatpush1.msra.mxu0 %v412
      %476 = vmatprep.subr.mxu0 0.0
      %477 = vmatpush1.msra.mxu0 %v413
      %478 = vmatprep.subr.mxu0 0.0
      %479 = vmatpush1.msra.mxu0 %v414
      %480 = vmatprep.subr.mxu0 0.0
      %481 = vmatpush1.msra.mxu0 %v415
      %482 = vmatprep.subr.mxu0 0.0
      %483 = vmatpush1.msra.mxu0 %v416
      %484 = vmatprep.subr.mxu0 0.0
      %485 = vmatpush1.msra.mxu0 %v417
      %486 = vmatprep.subr.mxu0 0.0
      %487 = vmatpush1.msra.mxu0 %v418
      %488 = vmatprep.subr.mxu0 0.0
      %489 = vmatpush1.msra.mxu0 %v419
      %490 = vmatprep.subr.mxu0 0.0
      %491 = vmatpush1.msra.mxu0 %v420
      %492 = vmatprep.mubr.f32.mxu0 %v374
      %493 = vmatmul.mubr.f32.gmra.mrb[0].mxu0 %v373
      %v494 = vpop.f32.mrb[0].mxu0
      %v495 = vadd.f32 %v426, %v494
      %v496 = vpop.f32.mrb[0].mxu0
      %497 = vmatprep.mubr.f32.mxu0 %v376
      %498 = vmatmul.mubr.f32.gmra.mrb[0].mxu0 %v375
      %v499 = vpop.f32.mrb[0].mxu0
      %v500 = vadd.f32 %v426, %v499
      %v501 = vpop.f32.mrb[0].mxu0
      %502 = vmatprep.mubr.f32.mxu0 %v378
      %503 = vmatmul.mubr.f32.gmra.mrb[0].mxu0 %v377
      %v504 = vpop.f32.mrb[0].mxu0
      %v505 = vadd.f32 %v426, %v504
      %v506 = vpop.f32.mrb[0].mxu0
      %507 = vmatprep.mubr.f32.mxu0 %v380
      %508 = vmatmul.mubr.f32.gmra.mrb[0].mxu0 %v379
      %v509 = vpop.f32.mrb[0].mxu0
      %v510 = vadd.f32 %v426, %v509
      %v511 = vpop.f32.mrb[0].mxu0
      %512 = vmatprep.mubr.f32.mxu0 %v382
      %513 = vmatmul.mubr.f32.gmra.mrb[0].mxu0 %v381
      %v514 = vpop.f32.mrb[0].mxu0
      %v515 = vadd.f32 %v426, %v514
      %v516 = vpop.f32.mrb[0].mxu0
      %517 = vmatprep.mubr.f32.mxu0 %v384
      %518 = vmatmul.mubr.f32.gmra.mrb[0].mxu0 %v383
      %v519 = vpop.f32.mrb[0].mxu0
      %v520 = vadd.f32 %v426, %v519
      %v521 = vpop.f32.mrb[0].mxu0
      %522 = vmatprep.mubr.f32.mxu0 %v386
      %523 = vmatmul.mubr.f32.gmra.mrb[0].mxu0 %v385
      %v524 = vpop.f32.mrb[0].mxu0
      %v525 = vadd.f32 %v426, %v524
      %v526 = vpop.f32.mrb[0].mxu0
      %527 = vmatprep.mubr.f32.mxu0 %v388
      %528 = vmatmul.mubr.f32.gmra.mrb[0].mxu0 %v387
      %v529 = vpop.f32.mrb[0].mxu0
      %v530 = vadd.f32 %v426, %v529
      %v531 = vpop.f32.mrb[0].mxu0
      %532 = vdwg.mxu0
      %533 = vst [vmem:[%s263] sm:$0xff] %v495
      %534 = vst [vmem:[%s263 + $0x8] sm:$0xff] %v500
      %535 = vst [vmem:[%s263 + $0x10] sm:$0xff] %v505
      %536 = vst [vmem:[%s263 + $0x18] sm:$0xff] %v510
      %537 = vst [vmem:[%s263 + $0x20] sm:$0xff] %v515
      %538 = vst [vmem:[%s263 + $0x28] sm:$0xff] %v520
      %539 = vst [vmem:[%s263 + $0x30] sm:$0xff] %v525
      %540 = vst [vmem:[%s263 + $0x38] sm:$0xff] %v530
      %v541 = vadd.f32 %v495, %v500
      %v542 = vadd.f32 %v541, %v505
      %v543 = vadd.f32 %v542, %v510
      %v544 = vadd.f32 %v543, %v515
      %v545 = vadd.f32 %v544, %v520
      %v546 = vadd.f32 %v545, %v525
      %v547 = vadd.f32 %v546, %v530
      %v548 = vrot.slane %v547, 4
      %v549 = vadd.f32 %v547, %v548
      %v550 = vrot.slane %v549, 2
      %v551 = vadd.f32 %v549, %v550
      %v552 = vrot.slane %v551, 1
      %v553 = vadd.f32 %v551, %v552
      %v554 = vmul.f32 %v495, %v495
      %v555 = vmul.f32 %v500, %v500
      %v556 = vmul.f32 %v505, %v505
      %v557 = vmul.f32 %v510, %v510
      %v558 = vmul.f32 %v515, %v515
      %v559 = vmul.f32 %v520, %v520
      %v560 = vmul.f32 %v525, %v525
      %v561 = vmul.f32 %v530, %v530
      %v562 = vadd.f32 %v554, %v555
      %v563 = vadd.f32 %v562, %v556
      %v564 = vadd.f32 %v563, %v557
      %v565 = vadd.f32 %v564, %v558
      %v566 = vadd.f32 %v565, %v559
      %v567 = vadd.f32 %v566, %v560
      %v568 = vadd.f32 %v567, %v561
      %v569 = vrot.slane %v568, 4
      %v570 = vadd.f32 %v568, %v569
      %v571 = vrot.slane %v570, 2
      %v572 = vadd.f32 %v570, %v571
      %v573 = vrot.slane %v572, 1
      %v574 = vadd.f32 %v572, %v573
      %v575 = vlaneseq
      %v576 = vshrl.u32 %v575, 7
      %vm577 = vcmp.eq.s32.totalorder %v576, 0
      %vm578 = vcmp.eq.s32.totalorder %v576, 1
      %v579 = vsel %vm578, %v574, 0.0
      %v580 = vsel %vm577, %v553, %v579
      %581 = vst [vmem:[%s268] sm:$0xff] %v580
      %s582 = smul.u32 8, %s18
      %p583 = scmp.lt.s32.totalorder %s582, 15
      %s584 = scalar_select %p583, %s582, 15
      %s585 = smul.addr %s584, 8
      %s586 = scalar_lea.vmem %s5, %s585
      %p587 = scmp.lt.s32.totalorder %s18, 1
      %s588 = scalar_select %p587, %s18, 1
      %s589 = smul.addr %s588, 8
      %s590 = scalar_lea.vmem %s6, %s589
      // Predicated region
      $region41: #{neuralnet_forward.4} parent=39 // pred_check
        %p591 = pneg %p146
      $region42: #{neuralnet_forward.4} parent=39 // pred_check_branch
        %593 = sbr.rel (%p591) target = $region44
      $region43: #{neuralnet_forward.4} parent=39 // pred_region
        %s594 = smul.u32 8, %s18
      $region44: #{neuralnet_forward.4} parent=39 // pred_fallthru
        _
      // Predicated region
      $region45: #{neuralnet_forward.4} parent=39 // pred_check
        %p595 = pneg %p172
      $region46: #{neuralnet_forward.4} parent=39 // pred_check_branch
        %597 = sbr.rel (%p595) target = $region48
      $region47: #{neuralnet_forward.4} parent=39 // pred_region
        _
      $region48: #{neuralnet_forward.4} parent=39 // pred_fallthru
        _
    $region40: #{neuralnet_forward.4} parent=5 // pred_fallthru
      _
    %p598 = scmp.le.s32.totalorder 2, %s13
    // Predicated region
    $region49: #{neuralnet_forward.4} parent=5 // pred_check
      %p599 = pneg %p598
    $region50: #{neuralnet_forward.4} parent=5 // pred_check_branch
      %601 = sbr.rel (%p599) target = $region52
    $region51: #{neuralnet_forward.4} parent=5 // pred_region
      %s602 = ssub.s32 %s13, 2
      // Predicated region
      $region53: #{neuralnet_forward.4} parent=51 // pred_check
        %p603 = pneg %p152
      $region54: #{neuralnet_forward.4} parent=51 // pred_check_branch
        %605 = sbr.rel (%p603) target = $region56
      $region55: #{neuralnet_forward.4} parent=51 // pred_region
        %s606 = smul.u32 8, %s19
        %p607 = scmp.lt.s32.totalorder %s606, 15
        %s608 = scalar_select %p607, %s606, 15
        %s609 = smul.addr %s608, 8
        %s610 = scalar_lea.vmem %s5, %s609
      $region56: #{neuralnet_forward.4} parent=51 // pred_fallthru
        _
      // Predicated region
      $region57: #{neuralnet_forward.4} parent=51 // pred_check
        %p611 = pneg %p178
      $region58: #{neuralnet_forward.4} parent=51 // pred_check_branch
        %613 = sbr.rel (%p611) target = $region60
      $region59: #{neuralnet_forward.4} parent=51 // pred_region
        %p614 = scmp.lt.s32.totalorder %s19, 1
        %s615 = scalar_select %p614, %s19, 1
        %s616 = smul.addr %s615, 8
        %s617 = scalar_lea.vmem %s6, %s616
      $region60: #{neuralnet_forward.4} parent=51 // pred_fallthru
        _
    $region52: #{neuralnet_forward.4} parent=5 // pred_fallthru
      _
  $region6: #{neuralnet_forward.4} parent=0 // loop_footer
    %s17 = sadd.s32 1, %s13
  $region7: #{neuralnet_forward.4} parent=0 // loop_footer_branch
    %12 = sbr.rel target = $region3
  $region8: #{neuralnet_forward.4} parent=0 // loop_exit
    _

// kernel: neuralnet_forward.3
$region0: #{neuralnet_forward.3}
  #allocation0 [shape = 'u32[]', space=smem, size = 0x4, offset = 0x4, fixed_abs, tag = 'smem constant byte address 0x4 - core index']
  #allocation1 [shape = 'u32[144,128]{1,0:T(1,128)}', space=vmem, size = 0x12000, scoped, tag = 'internal scratch']
  %s0 = inlined_call_operand.vmem [shape: f32[128,384], index: 0, kind: input, shape index: {}]
  %s1 = inlined_call_operand.vmem [shape: f32[1,384], index: 1, kind: input, shape index: {}, may-alias: {1,2}]
  %s2 = inlined_call_operand.vmem [shape: f32[1,384], index: 2, kind: input, shape index: {}, may-alias: {1,2}]
  %s3 = inlined_call_operand.vmem [shape: f32[384,256], index: 3, kind: input, shape index: {}]
  %s4 = inlined_call_operand.vmem [shape: f32[1,256], index: 4, kind: input, shape index: {}]
  %s5 = inlined_call_operand.vmem [shape: f32[128,256], index: 5, kind: output, shape index: {0}]
  %s6 = inlined_call_operand.vmem [shape: f32[2,8,256], index: 6, kind: output, shape index: {1}]
  %7 = xla_tuple %s5, %s6
  %s8 = sld [smem:[#allocation0]]
  $region61: #{neuralnet_forward.3} parent=0
    _
  %s10 = ssub.s32 1, %s8
  %s11 = scalar_select 0, %s10, %s8
  loop: start=0, step=1, limit=4
  $region2: #{neuralnet_forward.3} parent=0 // loop_pre_header
    _
  $region3: #{neuralnet_forward.3} parent=0 // loop_header
    %s13 = sphi 0, %s17
    %p14 = scmp.ge.s32.totalorder %s13, 4
    %s23 = sphi 0, %s25
    %s26 = sphi 0, %s23
    %s27 = sphi 0, %s26
    %s43 = sphi 0, %s27
    %s47 = sphi 0, %s47
    %s49 = sphi 0, %s47
    %s50 = sphi 0, %s49
    %s64 = sphi 0, %s50
    %s68 = sphi 0, %s68
    %s70 = sphi 0, %s68
    %s71 = sphi 0, %s70
    %s85 = sphi 0, %s71
    %s89 = sphi 0, %s89
    %s91 = sphi 0, %s89
    %s92 = sphi 0, %s91
    %s106 = sphi 0, %s92
    %s110 = sphi 0, %s110
    %s112 = sphi 0, %s110
    %s113 = sphi 0, %s112
    %s127 = sphi 0, %s113
    %s133 = sphi 0, %s135
    %s136 = sphi 0, %s133
    %s137 = sphi 0, %s136
    %s153 = sphi 0, %s137
    %s159 = sphi 0, %s161
    %s162 = sphi 0, %s159
    %s163 = sphi 0, %s162
    %s179 = sphi 0, %s163
  $region4: #{neuralnet_forward.3} parent=0 // loop_header_branch
    %16 = sbr.rel (%p14) target = $region8
  $region5: #{neuralnet_forward.3} parent=0 // loop_body
    %s18 = ssub.s32 %s13, 1
    %s19 = ssub.s32 %s13, 2
    %s20 = sadd.s32 %s13, 1
    %s21 = ssub.s32 %s13, %s20
    %p22 = scmp.eq.s32.totalorder %s21, 0
    %s24 = sadd.s32 %s23, 1
    %s25 = scalar_select %p22, %s23, %s24
    %p28 = pneg %p22
    %p29 = scmp.eq.s32.totalorder %s13, 1
    %p30 = por %p28, %p29
    %p31 = scmp.ne.s32.totalorder %s23, %s26
    %p32 = scmp.eq.s32.totalorder %s13, 0
    %p33 = por %p31, %p32
    %p34 = scmp.ne.s32.totalorder %s23, %s26
    %p35 = scmp.eq.s32.totalorder %s18, 1
    %p36 = por %p34, %p35
    %p37 = scmp.ne.s32.totalorder %s26, %s27
    %p38 = scmp.eq.s32.totalorder %s18, 0
    %p39 = por %p37, %p38
    %p40 = scmp.ne.s32.totalorder %s26, %s27
    %p41 = scmp.eq.s32.totalorder %s19, 1
    %p42 = por %p40, %p41
    %p44 = scmp.ne.s32.totalorder %s27, %s43
    %p45 = scmp.eq.s32.totalorder %s19, 0
    %p46 = por %p44, %p45
    %s48 = sadd.s32 %s47, 1
    %p51 = scmp.eq.s32.totalorder %s13, 1
    %p52 = scmp.ne.s32.totalorder %s47, %s49
    %p53 = scmp.eq.s32.totalorder %s13, 0
    %p54 = por %p52, %p53
    %p55 = scmp.ne.s32.totalorder %s47, %s49
    %p56 = scmp.eq.s32.totalorder %s18, 1
    %p57 = por %p55, %p56
    %p58 = scmp.ne.s32.totalorder %s49, %s50
    %p59 = scmp.eq.s32.totalorder %s18, 0
    %p60 = por %p58, %p59
    %p61 = scmp.ne.s32.totalorder %s49, %s50
    %p62 = scmp.eq.s32.totalorder %s19, 1
    %p63 = por %p61, %p62
    %p65 = scmp.ne.s32.totalorder %s50, %s64
    %p66 = scmp.eq.s32.totalorder %s19, 0
    %p67 = por %p65, %p66
    %s69 = sadd.s32 %s68, 1
    %p72 = scmp.eq.s32.totalorder %s13, 1
    %p73 = scmp.ne.s32.totalorder %s68, %s70
    %p74 = scmp.eq.s32.totalorder %s13, 0
    %p75 = por %p73, %p74
    %p76 = scmp.ne.s32.totalorder %s68, %s70
    %p77 = scmp.eq.s32.totalorder %s18, 1
    %p78 = por %p76, %p77
    %p79 = scmp.ne.s32.totalorder %s70, %s71
    %p80 = scmp.eq.s32.totalorder %s18, 0
    %p81 = por %p79, %p80
    %p82 = scmp.ne.s32.totalorder %s70, %s71
    %p83 = scmp.eq.s32.totalorder %s19, 1
    %p84 = por %p82, %p83
    %p86 = scmp.ne.s32.totalorder %s71, %s85
    %p87 = scmp.eq.s32.totalorder %s19, 0
    %p88 = por %p86, %p87
    %s90 = sadd.s32 %s89, 1
    %p93 = scmp.eq.s32.totalorder %s13, 1
    %p94 = scmp.ne.s32.totalorder %s89, %s91
    %p95 = scmp.eq.s32.totalorder %s13, 0
    %p96 = por %p94, %p95
    %p97 = scmp.ne.s32.totalorder %s89, %s91
    %p98 = scmp.eq.s32.totalorder %s18, 1
    %p99 = por %p97, %p98
    %p100 = scmp.ne.s32.totalorder %s91, %s92
    %p101 = scmp.eq.s32.totalorder %s18, 0
    %p102 = por %p100, %p101
    %p103 = scmp.ne.s32.totalorder %s91, %s92
    %p104 = scmp.eq.s32.totalorder %s19, 1
    %p105 = por %p103, %p104
    %p107 = scmp.ne.s32.totalorder %s92, %s106
    %p108 = scmp.eq.s32.totalorder %s19, 0
    %p109 = por %p107, %p108
    %s111 = sadd.s32 %s110, 1
    %p114 = scmp.eq.s32.totalorder %s13, 1
    %p115 = scmp.ne.s32.totalorder %s110, %s112
    %p116 = scmp.eq.s32.totalorder %s13, 0
    %p117 = por %p115, %p116
    %p118 = scmp.ne.s32.totalorder %s110, %s112
    %p119 = scmp.eq.s32.totalorder %s18, 1
    %p120 = por %p118, %p119
    %p121 = scmp.ne.s32.totalorder %s112, %s113
    %p122 = scmp.eq.s32.totalorder %s18, 0
    %p123 = por %p121, %p122
    %p124 = scmp.ne.s32.totalorder %s112, %s113
    %p125 = scmp.eq.s32.totalorder %s19, 1
    %p126 = por %p124, %p125
    %p128 = scmp.ne.s32.totalorder %s113, %s127
    %p129 = scmp.eq.s32.totalorder %s19, 0
    %p130 = por %p128, %p129
    %s131 = ssub.s32 %s13, %s20
    %p132 = scmp.eq.s32.totalorder %s131, 0
    %s134 = sadd.s32 %s133, 1
    %s135 = scalar_select %p132, %s133, %s134
    %p138 = pneg %p132
    %p139 = scmp.eq.s32.totalorder %s13, 1
    %p140 = por %p138, %p139
    %p141 = scmp.ne.s32.totalorder %s133, %s136
    %p142 = scmp.eq.s32.totalorder %s13, 0
    %p143 = por %p141, %p142
    %p144 = scmp.ne.s32.totalorder %s133, %s136
    %p145 = scmp.eq.s32.totalorder %s18, 1
    %p146 = por %p144, %p145
    %p147 = scmp.ne.s32.totalorder %s136, %s137
    %p148 = scmp.eq.s32.totalorder %s18, 0
    %p149 = por %p147, %p148
    %p150 = scmp.ne.s32.totalorder %s136, %s137
    %p151 = scmp.eq.s32.totalorder %s19, 1
    %p152 = por %p150, %p151
    %p154 = scmp.ne.s32.totalorder %s137, %s153
    %p155 = scmp.eq.s32.totalorder %s19, 0
    %p156 = por %p154, %p155
    %s157 = ssub.s32 %s13, %s20
    %p158 = scmp.eq.s32.totalorder %s157, 0
    %s160 = sadd.s32 %s159, 1
    %s161 = scalar_select %p158, %s159, %s160
    %p164 = pneg %p158
    %p165 = scmp.eq.s32.totalorder %s13, 1
    %p166 = por %p164, %p165
    %p167 = scmp.ne.s32.totalorder %s159, %s162
    %p168 = scmp.eq.s32.totalorder %s13, 0
    %p169 = por %p167, %p168
    %p170 = scmp.ne.s32.totalorder %s159, %s162
    %p171 = scmp.eq.s32.totalorder %s18, 1
    %p172 = por %p170, %p171
    %p173 = scmp.ne.s32.totalorder %s162, %s163
    %p174 = scmp.eq.s32.totalorder %s18, 0
    %p175 = por %p173, %p174
    %p176 = scmp.ne.s32.totalorder %s162, %s163
    %p177 = scmp.eq.s32.totalorder %s19, 1
    %p178 = por %p176, %p177
    %p180 = scmp.ne.s32.totalorder %s163, %s179
    %p181 = scmp.eq.s32.totalorder %s19, 0
    %p182 = por %p180, %p181
    %p183 = scmp.le.s32.totalorder 1, %s13
    %p184 = scmp.lt.s32.totalorder %s13, 3
    %p185 = pnand %p183, %p184
    %p186 = pneg %p185
    // Predicated region
    $region9: #{neuralnet_forward.3} parent=5 // pred_check
      _
    $region10: #{neuralnet_forward.3} parent=5 // pred_check_branch
      %188 = sbr.rel (%p185) target = $region12
    $region11: #{neuralnet_forward.3} parent=5 // pred_region
      %s189 = ssub.s32 %s13, 1
      // Predicated region
      $region13: #{neuralnet_forward.3} parent=11 // pred_check
        %p190 = pneg %p60
      $region14: #{neuralnet_forward.3} parent=11 // pred_check_branch
        %192 = sbr.rel (%p190) target = $region16
      $region15: #{neuralnet_forward.3} parent=11 // pred_region
        _
      $region16: #{neuralnet_forward.3} parent=11 // pred_fallthru
        _
      // Predicated region
      $region17: #{neuralnet_forward.3} parent=11 // pred_check
        %p193 = pneg %p81
      $region18: #{neuralnet_forward.3} parent=11 // pred_check_branch
        %195 = sbr.rel (%p193) target = $region20
      $region19: #{neuralnet_forward.3} parent=11 // pred_region
        _
      $region20: #{neuralnet_forward.3} parent=11 // pred_fallthru
        _
      // Predicated region
      $region21: #{neuralnet_forward.3} parent=11 // pred_check
        %p196 = pneg %p102
      $region22: #{neuralnet_forward.3} parent=11 // pred_check_branch
        %198 = sbr.rel (%p196) target = $region24
      $region23: #{neuralnet_forward.3} parent=11 // pred_region
        _
      $region24: #{neuralnet_forward.3} parent=11 // pred_fallthru
        _
      // Predicated region
      $region25: #{neuralnet_forward.3} parent=11 // pred_check
        %p199 = pneg %p123
      $region26: #{neuralnet_forward.3} parent=11 // pred_check_branch
        %201 = sbr.rel (%p199) target = $region28
      $region27: #{neuralnet_forward.3} parent=11 // pred_region
        _
      $region28: #{neuralnet_forward.3} parent=11 // pred_fallthru
        _
    $region12: #{neuralnet_forward.3} parent=5 // pred_fallthru
      _
    %p202 = scmp.lt.s32.totalorder %s13, 2
    // Predicated region
    $region29: #{neuralnet_forward.3} parent=5 // pred_check
      %p203 = pneg %p202
    $region30: #{neuralnet_forward.3} parent=5 // pred_check_branch
      %205 = sbr.rel (%p203) target = $region32
    $region31: #{neuralnet_forward.3} parent=5 // pred_region
      // Predicated region
      $region33: #{neuralnet_forward.3} parent=31 // pred_check
        %p206 = pneg %p33
      $region34: #{neuralnet_forward.3} parent=31 // pred_check_branch
        %208 = sbr.rel (%p206) target = $region36
      $region35: #{neuralnet_forward.3} parent=31 // pred_region
        %s209 = smul.u32 8, %s13
        %p210 = scmp.lt.s32.totalorder %s209, 15
        %s211 = scalar_select %p210, %s209, 15
        %s212 = smul.addr %s211, 3
        %s213 = smul.addr %s212, 8
        %s214 = scalar_lea.vmem %s0, %s213
        %s215 = smul.u32 8, %s13
      $region36: #{neuralnet_forward.3} parent=31 // pred_fallthru
        _
    $region32: #{neuralnet_forward.3} parent=5 // pred_fallthru
      _
    %p216 = scmp.le.s32.totalorder 1, %s13
    %p217 = scmp.lt.s32.totalorder %s13, 3
    %p218 = pnand %p216, %p217
    %p219 = pneg %p218
    // Predicated region
    $region37: #{neuralnet_forward.3} parent=5 // pred_check
      _
    $region38: #{neuralnet_forward.3} parent=5 // pred_check_branch
      %221 = sbr.rel (%p218) target = $region40
    $region39: #{neuralnet_forward.3} parent=5 // pred_region
      %s222 = ssub.s32 %s13, 1
      %s223 = smul.u32 8, %s18
      %p224 = scmp.lt.s32.totalorder %s223, 15
      %s225 = scalar_select %p224, %s223, 15
      %s226 = smul.addr %s225, 3
      %s227 = smul.addr %s226, 8
      %s228 = scalar_lea.vmem %s0, %s227
      %p229 = pneg %p39
      %p230 = pneg %p36
      %p231 = pneg %p60
      %p232 = pneg %p57
      %p233 = pneg %p81
      %p234 = pneg %p78
      %p235 = pneg %p102
      %p236 = pneg %p99
      %p237 = pneg %p123
      %p238 = pneg %p120
      %p239 = pneg %p149
      %p240 = pneg %p146
      %s241 = smul.u32 8, %s18
      %p242 = scmp.lt.s32.totalorder %s241, 15
      %s243 = scalar_select %p242, %s241, 15
      %s244 = smul.addr %s243, 2
      %s245 = smul.addr %s244, 8
      %s246 = scalar_lea.vmem %s5, %s245
      %p247 = pneg %p175
      %p248 = pneg %p172
      %p249 = scmp.lt.s32.totalorder %s18, 1
      %s250 = scalar_select %p249, %s18, 1
      %s251 = smul.addr %s250, 2
      %s252 = smul.addr %s251, 8
      %s253 = scalar_lea.vmem %s6, %s252
      %s254 = smul.u32 8, %s18
      %p255 = scmp.lt.s32.totalorder %s254, 15
      %s256 = scalar_select %p255, %s254, 15
      %s257 = smul.addr %s256, 3
      %s258 = smul.addr %s257, 8
      %s259 = scalar_lea.vmem %s0, %s258
      %s260 = smul.u32 8, %s18
      %s261 = smul.u32 8, %s18
      %p262 = scmp.lt.s32.totalorder %s261, 15
      %s263 = scalar_select %p262, %s261, 15
      %s264 = smul.addr %s263, 2
      %s265 = smul.addr %s264, 8
      %s266 = scalar_lea.vmem %s5, %s265
      %s267 = smul.u32 8, %s18
      %p268 = scmp.lt.s32.totalorder %s18, 1
      %s269 = scalar_select %p268, %s18, 1
      %s270 = smul.addr %s269, 2
      %s271 = smul.addr %s270, 8
      %s272 = scalar_lea.vmem %s6, %s271
      %v273 = vld [vmem:[%s259] sm:$0xff]
      %v274 = vld [vmem:[%s259 + $0x8] sm:$0xff]
      %v275 = vld [vmem:[%s259 + $0x10] sm:$0xff]
      %v276 = vld [vmem:[%s259 + $0x18] sm:$0xff]
      %v277 = vld [vmem:[%s259 + $0x20] sm:$0xff]
      %v278 = vld [vmem:[%s259 + $0x28] sm:$0xff]
      %v279 = vld [vmem:[%s259 + $0x30] sm:$0xff]
      %v280 = vld [vmem:[%s259 + $0x38] sm:$0xff]
      %v281 = vld [vmem:[%s259 + $0x40] sm:$0xff]
      %v282 = vld [vmem:[%s259 + $0x48] sm:$0xff]
      %v283 = vld [vmem:[%s259 + $0x50] sm:$0xff]
      %v284 = vld [vmem:[%s259 + $0x58] sm:$0xff]
      %v285 = vld [vmem:[%s259 + $0x60] sm:$0xff]
      %v286 = vld [vmem:[%s259 + $0x68] sm:$0xff]
      %v287 = vld [vmem:[%s259 + $0x70] sm:$0xff]
      %v288 = vld [vmem:[%s259 + $0x78] sm:$0xff]
      %v289 = vld [vmem:[%s259 + $0x80] sm:$0xff]
      %v290 = vld [vmem:[%s259 + $0x88] sm:$0xff]
      %v291 = vld [vmem:[%s259 + $0x90] sm:$0xff]
      %v292 = vld [vmem:[%s259 + $0x98] sm:$0xff]
      %v293 = vld [vmem:[%s259 + $0xa0] sm:$0xff]
      %v294 = vld [vmem:[%s259 + $0xa8] sm:$0xff]
      %v295 = vld [vmem:[%s259 + $0xb0] sm:$0xff]
      %v296 = vld [vmem:[%s259 + $0xb8] sm:$0xff]
      %v297 = vld [vmem:[%s3] sm:$0xff]
      %v298 = vld [vmem:[%s3 + $0x8] sm:$0xff]
      %v299 = vld [vmem:[%s3 + $0x10] sm:$0xff]
      %v300 = vld [vmem:[%s3 + $0x18] sm:$0xff]
      %v301 = vld [vmem:[%s3 + $0x20] sm:$0xff]
      %v302 = vld [vmem:[%s3 + $0x28] sm:$0xff]
      %v303 = vld [vmem:[%s3 + $0x30] sm:$0xff]
      %v304 = vld [vmem:[%s3 + $0x38] sm:$0xff]
      %v305 = vld [vmem:[%s3 + $0x40] sm:$0xff]
      %v306 = vld [vmem:[%s3 + $0x48] sm:$0xff]
      %v307 = vld [vmem:[%s3 + $0x50] sm:$0xff]
      %v308 = vld [vmem:[%s3 + $0x58] sm:$0xff]
      %v309 = vld [vmem:[%s3 + $0x60] sm:$0xff]
      %v310 = vld [vmem:[%s3 + $0x68] sm:$0xff]
      %v311 = vld [vmem:[%s3 + $0x70] sm:$0xff]
      %v312 = vld [vmem:[%s3 + $0x78] sm:$0xff]
      %v313 = vld [vmem:[%s3 + $0x80] sm:$0xff]
      %v314 = vld [vmem:[%s3 + $0x88] sm:$0xff]
      %v315 = vld [vmem:[%s3 + $0x90] sm:$0xff]
      %v316 = vld [vmem:[%s3 + $0x98] sm:$0xff]
      %v317 = vld [vmem:[%s3 + $0xa0] sm:$0xff]
      %v318 = vld [vmem:[%s3 + $0xa8] sm:$0xff]
      %v319 = vld [vmem:[%s3 + $0xb0] sm:$0xff]
      %v320 = vld [vmem:[%s3 + $0xb8] sm:$0xff]
      %v321 = vld [vmem:[%s3 + $0xc0] sm:$0xff]
      %v322 = vld [vmem:[%s3 + $0xc8] sm:$0xff]
      %v323 = vld [vmem:[%s3 + $0xd0] sm:$0xff]
      %v324 = vld [vmem:[%s3 + $0xd8] sm:$0xff]
      %v325 = vld [vmem:[%s3 + $0xe0] sm:$0xff]
      %v326 = vld [vmem:[%s3 + $0xe8] sm:$0xff]
      %v327 = vld [vmem:[%s3 + $0xf0] sm:$0xff]
      %v328 = vld [vmem:[%s3 + $0xf8] sm:$0xff]
      %v329 = vld [vmem:[%s3 + $0x100] sm:$0xff]
      %v330 = vld [vmem:[%s3 + $0x108] sm:$0xff]
      %v331 = vld [vmem:[%s3 + $0x110] sm:$0xff]
      %v332 = vld [vmem:[%s3 + $0x118] sm:$0xff]
      %v333 = vld [vmem:[%s3 + $0x120] sm:$0xff]
      %v334 = vld [vmem:[%s3 + $0x128] sm:$0xff]
      %v335 = vld [vmem:[%s3 + $0x130] sm:$0xff]
      %v336 = vld [vmem:[%s3 + $0x138] sm:$0xff]
      %v337 = vld [vmem:[%s3 + $0x140] sm:$0xff]
      %v338 = vld [vmem:[%s3 + $0x148] sm:$0xff]
      %v339 = vld [vmem:[%s3 + $0x150] sm:$0xff]
      %v340 = vld [vmem:[%s3 + $0x158] sm:$0xff]
      %v341 = vld [vmem:[%s3 + $0x160] sm:$0xff]
      %v342 = vld [vmem:[%s3 + $0x168] sm:$0xff]
      %v343 = vld [vmem:[%s3 + $0x170] sm:$0xff]
      %v344 = vld [vmem:[%s3 + $0x178] sm:$0xff]
      %v345 = vld [vmem:[%s3 + $0x180] sm:$0xff]
      %v346 = vld [vmem:[%s3 + $0x188] sm:$0xff]
      %v347 = vld [vmem:[%s3 + $0x190] sm:$0xff]
      %v348 = vld [vmem:[%s3 + $0x198] sm:$0xff]
      %v349 = vld [vmem:[%s3 + $0x1a0] sm:$0xff]
      %v350 = vld [vmem:[%s3 + $0x1a8] sm:$0xff]
      %v351 = vld [vmem:[%s3 + $0x1b0] sm:$0xff]
      %v352 = vld [vmem:[%s3 + $0x1b8] sm:$0xff]
      %v353 = vld [vmem:[%s3 + $0x1c0] sm:$0xff]
      %v354 = vld [vmem:[%s3 + $0x1c8] sm:$0xff]
      %v355 = vld [vmem:[%s3 + $0x1d0] sm:$0xff]
      %v356 = vld [vmem:[%s3 + $0x1d8] sm:$0xff]
      %v357 = vld [vmem:[%s3 + $0x1e0] sm:$0xff]
      %v358 = vld [vmem:[%s3 + $0x1e8] sm:$0xff]
      %v359 = vld [vmem:[%s3 + $0x1f0] sm:$0xff]
      %v360 = vld [vmem:[%s3 + $0x1f8] sm:$0xff]
      %v361 = vld [vmem:[%s3 + $0x200] sm:$0xff]
      %v362 = vld [vmem:[%s3 + $0x208] sm:$0xff]
      %v363 = vld [vmem:[%s3 + $0x210] sm:$0xff]
      %v364 = vld [vmem:[%s3 + $0x218] sm:$0xff]
      %v365 = vld [vmem:[%s3 + $0x220] sm:$0xff]
      %v366 = vld [vmem:[%s3 + $0x228] sm:$0xff]
      %v367 = vld [vmem:[%s3 + $0x230] sm:$0xff]
      %v368 = vld [vmem:[%s3 + $0x238] sm:$0xff]
      %v369 = vld [vmem:[%s3 + $0x240] sm:$0xff]
      %v370 = vld [vmem:[%s3 + $0x248] sm:$0xff]
      %v371 = vld [vmem:[%s3 + $0x250] sm:$0xff]
      %v372 = vld [vmem:[%s3 + $0x258] sm:$0xff]
      %v373 = vld [vmem:[%s3 + $0x260] sm:$0xff]
      %v374 = vld [vmem:[%s3 + $0x268] sm:$0xff]
      %v375 = vld [vmem:[%s3 + $0x270] sm:$0xff]
      %v376 = vld [vmem:[%s3 + $0x278] sm:$0xff]
      %v377 = vld [vmem:[%s3 + $0x280] sm:$0xff]
      %v378 = vld [vmem:[%s3 + $0x288] sm:$0xff]
      %v379 = vld [vmem:[%s3 + $0x290] sm:$0xff]
      %v380 = vld [vmem:[%s3 + $0x298] sm:$0xff]
      %v381 = vld [vmem:[%s3 + $0x2a0] sm:$0xff]
      %v382 = vld [vmem:[%s3 + $0x2a8] sm:$0xff]
      %v383 = vld [vmem:[%s3 + $0x2b0] sm:$0xff]
      %v384 = vld [vmem:[%s3 + $0x2b8] sm:$0xff]
      %v385 = vld [vmem:[%s3 + $0x2c0] sm:$0xff]
      %v386 = vld [vmem:[%s3 + $0x2c8] sm:$0xff]
      %v387 = vld [vmem:[%s3 + $0x2d0] sm:$0xff]
      %v388 = vld [vmem:[%s3 + $0x2d8] sm:$0xff]
      %v389 = vld [vmem:[%s3 + $0x2e0] sm:$0xff]
      %v390 = vld [vmem:[%s3 + $0x2e8] sm:$0xff]
      %v391 = vld [vmem:[%s3 + $0x2f0] sm:$0xff]
      %v392 = vld [vmem:[%s3 + $0x2f8] sm:$0xff]
      %v393 = vld [vmem:[%s4] sm:$0x3]
      %v395 = vlaneseq
      %v396 = vshrl.u32 %v395, 7
      %v397 = vsub.s32 0, %v396
      %v398 = vrot.slane %v393, %v397
      %v399 = vlaneseq
      %v400 = vshrl.u32 %v399, 7
      %v401 = vsub.s32 1, %v400
      %v402 = vrot.slane %v393, %v401
      %405 = vmatprep.subr.mxu0 %v298
      %406 = vmatpush1.msra.mxu0 %v297
      %407 = vmatprep.subr.mxu0 %v300
      %408 = vmatpush1.msra.mxu0 %v299
      %409 = vmatprep.subr.mxu0 %v302
      %410 = vmatpush1.msra.mxu0 %v301
      %411 = vmatprep.subr.mxu0 %v304
      %412 = vmatpush1.msra.mxu0 %v303
      %413 = vmatprep.subr.mxu0 %v306
      %414 = vmatpush1.msra.mxu0 %v305
      %415 = vmatprep.subr.mxu0 %v308
      %416 = vmatpush1.msra.mxu0 %v307
      %417 = vmatprep.subr.mxu0 %v310
      %418 = vmatpush1.msra.mxu0 %v309
      %419 = vmatprep.subr.mxu0 %v312
      %420 = vmatpush1.msra.mxu0 %v311
      %421 = vmatprep.subr.mxu0 %v314
      %422 = vmatpush1.msra.mxu0 %v313
      %423 = vmatprep.subr.mxu0 %v316
      %424 = vmatpush1.msra.mxu0 %v315
      %425 = vmatprep.subr.mxu0 %v318
      %426 = vmatpush1.msra.mxu0 %v317
      %427 = vmatprep.subr.mxu0 %v320
      %428 = vmatpush1.msra.mxu0 %v319
      %429 = vmatprep.subr.mxu0 %v322
      %430 = vmatpush1.msra.mxu0 %v321
      %431 = vmatprep.subr.mxu0 %v324
      %432 = vmatpush1.msra.mxu0 %v323
      %433 = vmatprep.subr.mxu0 %v326
      %434 = vmatpush1.msra.mxu0 %v325
      %435 = vmatprep.subr.mxu0 %v328
      %436 = vmatpush1.msra.mxu0 %v327
      %437 = vmatprep.subr.mxu0 %v330
      %438 = vmatpush1.msra.mxu0 %v329
      %439 = vmatprep.subr.mxu0 %v332
      %440 = vmatpush1.msra.mxu0 %v331
      %441 = vmatprep.subr.mxu0 %v334
      %442 = vmatpush1.msra.mxu0 %v333
      %443 = vmatprep.subr.mxu0 %v336
      %444 = vmatpush1.msra.mxu0 %v335
      %445 = vmatprep.subr.mxu0 %v338
      %446 = vmatpush1.msra.mxu0 %v337
      %447 = vmatprep.subr.mxu0 %v340
      %448 = vmatpush1.msra.mxu0 %v339
      %449 = vmatprep.subr.mxu0 %v342
      %450 = vmatpush1.msra.mxu0 %v341
      %451 = vmatprep.subr.mxu0 %v344
      %452 = vmatpush1.msra.mxu0 %v343
      %453 = vmatprep.subr.mxu0 %v346
      %454 = vmatpush1.msra.mxu0 %v345
      %455 = vmatprep.subr.mxu0 %v348
      %456 = vmatpush1.msra.mxu0 %v347
      %457 = vmatprep.subr.mxu0 %v350
      %458 = vmatpush1.msra.mxu0 %v349
      %459 = vmatprep.subr.mxu0 %v352
      %460 = vmatpush1.msra.mxu0 %v351
      %461 = vmatprep.subr.mxu0 %v354
      %462 = vmatpush1.msra.mxu0 %v353
      %463 = vmatprep.subr.mxu0 %v356
      %464 = vmatpush1.msra.mxu0 %v355
      %465 = vmatprep.subr.mxu0 %v358
      %466 = vmatpush1.msra.mxu0 %v357
      %467 = vmatprep.subr.mxu0 %v360
      %468 = vmatpush1.msra.mxu0 %v359
      %469 = vmatprep.mubr.f32.mxu0 %v274
      %470 = vmatmul.mubr.f32.gmra.mrb[0].mxu0 %v273
      %v471 = vpop.f32.mrb[0].mxu0
      %v472 = vadd.f32 %v398, %v471
      %v473 = vpop.f32.mrb[0].mxu0
      %v474 = vadd.f32 %v402, %v473
      %475 = vmatprep.mubr.f32.mxu0 %v277
      %476 = vmatmul.mubr.f32.gmra.mrb[0].mxu0 %v276
      %v477 = vpop.f32.mrb[0].mxu0
      %v478 = vadd.f32 %v398, %v477
      %v479 = vpop.f32.mrb[0].mxu0
      %v480 = vadd.f32 %v402, %v479
      %481 = vmatprep.mubr.f32.mxu0 %v280
      %482 = vmatmul.mubr.f32.gmra.mrb[0].mxu0 %v279
      %v483 = vpop.f32.mrb[0].mxu0
      %v484 = vadd.f32 %v398, %v483
      %v485 = vpop.f32.mrb[0].mxu0
      %v486 = vadd.f32 %v402, %v485
      %487 = vmatprep.mubr.f32.mxu0 %v283
      %488 = vmatmul.mubr.f32.gmra.mrb[0].mxu0 %v282
      %v489 = vpop.f32.mrb[0].mxu0
      %v490 = vadd.f32 %v398, %v489
      %v491 = vpop.f32.mrb[0].mxu0
      %v492 = vadd.f32 %v402, %v491
      %493 = vmatprep.mubr.f32.mxu0 %v286
      %494 = vmatmul.mubr.f32.gmra.mrb[0].mxu0 %v285
      %v495 = vpop.f32.mrb[0].mxu0
      %v496 = vadd.f32 %v398, %v495
      %v497 = vpop.f32.mrb[0].mxu0
      %v498 = vadd.f32 %v402, %v497
      %499 = vmatprep.mubr.f32.mxu0 %v289
      %500 = vmatmul.mubr.f32.gmra.mrb[0].mxu0 %v288
      %v501 = vpop.f32.mrb[0].mxu0
      %v502 = vadd.f32 %v398, %v501
      %v503 = vpop.f32.mrb[0].mxu0
      %v504 = vadd.f32 %v402, %v503
      %505 = vmatprep.mubr.f32.mxu0 %v292
      %506 = vmatmul.mubr.f32.gmra.mrb[0].mxu0 %v291
      %v507 = vpop.f32.mrb[0].mxu0
      %v508 = vadd.f32 %v398, %v507
      %v509 = vpop.f32.mrb[0].mxu0
      %v510 = vadd.f32 %v402, %v509
      %511 = vmatprep.mubr.f32.mxu0 %v295
      %512 = vmatmul.mubr.f32.gmra.mrb[0].mxu0 %v294
      %v513 = vpop.f32.mrb[0].mxu0
      %v514 = vadd.f32 %v398, %v513
      %v515 = vpop.f32.mrb[0].mxu0
      %v516 = vadd.f32 %v402, %v515
      %517 = vdwg.mxu0
      %518 = vmatprep.subr.mxu0 %v362
      %519 = vmatpush1.msra.mxu0 %v361
      %520 = vmatprep.subr.mxu0 %v364
      %521 = vmatpush1.msra.mxu0 %v363
      %522 = vmatprep.subr.mxu0 %v366
      %523 = vmatpush1.msra.mxu0 %v365
      %524 = vmatprep.subr.mxu0 %v368
      %525 = vmatpush1.msra.mxu0 %v367
      %526 = vmatprep.subr.mxu0 %v370
      %527 = vmatpush1.msra.mxu0 %v369
      %528 = vmatprep.subr.mxu0 %v372
      %529 = vmatpush1.msra.mxu0 %v371
      %530 = vmatprep.subr.mxu0 %v374
      %531 = vmatpush1.msra.mxu0 %v373
      %532 = vmatprep.subr.mxu0 %v376
      %533 = vmatpush1.msra.mxu0 %v375
      %534 = vmatprep.subr.mxu0 %v378
      %535 = vmatpush1.msra.mxu0 %v377
      %536 = vmatprep.subr.mxu0 %v380
      %537 = vmatpush1.msra.mxu0 %v379
      %538 = vmatprep.subr.mxu0 %v382
      %539 = vmatpush1.msra.mxu0 %v381
      %540 = vmatprep.subr.mxu0 %v384
      %541 = vmatpush1.msra.mxu0 %v383
      %542 = vmatprep.subr.mxu0 %v386
      %543 = vmatpush1.msra.mxu0 %v385
      %544 = vmatprep.subr.mxu0 %v388
      %545 = vmatpush1.msra.mxu0 %v387
      %546 = vmatprep.subr.mxu0 %v390
      %547 = vmatpush1.msra.mxu0 %v389
      %548 = vmatprep.subr.mxu0 %v392
      %549 = vmatpush1.msra.mxu0 %v391
      %550 = vmatprep.subr.mxu0 0.0
      %551 = vmatpush1.msra.mxu0 0.0
      %552 = vmatprep.subr.mxu0 0.0
      %553 = vmatpush1.msra.mxu0 0.0
      %554 = vmatprep.subr.mxu0 0.0
      %555 = vmatpush1.msra.mxu0 0.0
      %556 = vmatprep.subr.mxu0 0.0
      %557 = vmatpush1.msra.mxu0 0.0
      %558 = vmatprep.subr.mxu0 0.0
      %559 = vmatpush1.msra.mxu0 0.0
      %560 = vmatprep.subr.mxu0 0.0
      %561 = vmatpush1.msra.mxu0 0.0
      %562 = vmatprep.subr.mxu0 0.0
      %563 = vmatpush1.msra.mxu0 0.0
      %564 = vmatprep.subr.mxu0 0.0
      %565 = vmatpush1.msra.mxu0 0.0
      %566 = vmatprep.subr.mxu0 0.0
      %567 = vmatpush1.msra.mxu0 0.0
      %568 = vmatprep.subr.mxu0 0.0
      %569 = vmatpush1.msra.mxu0 0.0
      %570 = vmatprep.subr.mxu0 0.0
      %571 = vmatpush1.msra.mxu0 0.0
      %572 = vmatprep.subr.mxu0 0.0
      %573 = vmatpush1.msra.mxu0 0.0
      %574 = vmatprep.subr.mxu0 0.0
      %575 = vmatpush1.msra.mxu0 0.0
      %576 = vmatprep.subr.mxu0 0.0
      %577 = vmatpush1.msra.mxu0 0.0
      %578 = vmatprep.subr.mxu0 0.0
      %579 = vmatpush1.msra.mxu0 0.0
      %580 = vmatprep.subr.mxu0 0.0
      %581 = vmatpush1.msra.mxu0 0.0
      %582 = vmatprep.mubr.f32.mxu0 0.0
      %583 = vmatmul.mubr.f32.gmra.mrb[0].mxu0 %v275
      %v584 = vpop.f32.mrb[0].mxu0
      %v585 = vadd.f32 %v472, %v584
      %v586 = vpop.f32.mrb[0].mxu0
      %v587 = vadd.f32 %v474, %v586
      %588 = vmatprep.mubr.f32.mxu0 0.0
      %589 = vmatmul.mubr.f32.gmra.mrb[0].mxu0 %v278
      %v590 = vpop.f32.mrb[0].mxu0
      %v591 = vadd.f32 %v478, %v590
      %v592 = vpop.f32.mrb[0].mxu0
      %v593 = vadd.f32 %v480, %v592
      %594 = vmatprep.mubr.f32.mxu0 0.0
      %595 = vmatmul.mubr.f32.gmra.mrb[0].mxu0 %v281
      %v596 = vpop.f32.mrb[0].mxu0
      %v597 = vadd.f32 %v484, %v596
      %v598 = vpop.f32.mrb[0].mxu0
      %v599 = vadd.f32 %v486, %v598
      %600 = vmatprep.mubr.f32.mxu0 0.0
      %601 = vmatmul.mubr.f32.gmra.mrb[0].mxu0 %v284
      %v602 = vpop.f32.mrb[0].mxu0
      %v603 = vadd.f32 %v490, %v602
      %v604 = vpop.f32.mrb[0].mxu0
      %v605 = vadd.f32 %v492, %v604
      %606 = vmatprep.mubr.f32.mxu0 0.0
      %607 = vmatmul.mubr.f32.gmra.mrb[0].mxu0 %v287
      %v608 = vpop.f32.mrb[0].mxu0
      %v609 = vadd.f32 %v496, %v608
      %v610 = vpop.f32.mrb[0].mxu0
      %v611 = vadd.f32 %v498, %v610
      %612 = vmatprep.mubr.f32.mxu0 0.0
      %613 = vmatmul.mubr.f32.gmra.mrb[0].mxu0 %v290
      %v614 = vpop.f32.mrb[0].mxu0
      %v615 = vadd.f32 %v502, %v614
      %v616 = vpop.f32.mrb[0].mxu0
      %v617 = vadd.f32 %v504, %v616
      %618 = vmatprep.mubr.f32.mxu0 0.0
      %619 = vmatmul.mubr.f32.gmra.mrb[0].mxu0 %v293
      %v620 = vpop.f32.mrb[0].mxu0
      %v621 = vadd.f32 %v508, %v620
      %v622 = vpop.f32.mrb[0].mxu0
      %v623 = vadd.f32 %v510, %v622
      %624 = vmatprep.mubr.f32.mxu0 0.0
      %625 = vmatmul.mubr.f32.gmra.mrb[0].mxu0 %v296
      %v626 = vpop.f32.mrb[0].mxu0
      %v627 = vadd.f32 %v514, %v626
      %v628 = vpop.f32.mrb[0].mxu0
      %v629 = vadd.f32 %v516, %v628
      %630 = vdwg.mxu0
      %631 = vst [vmem:[%s266] sm:$0xff] %v585
      %632 = vst [vmem:[%s266 + $0x8] sm:$0xff] %v587
      %633 = vst [vmem:[%s266 + $0x10] sm:$0xff] %v591
      %634 = vst [vmem:[%s266 + $0x18] sm:$0xff] %v593
      %635 = vst [vmem:[%s266 + $0x20] sm:$0xff] %v597
      %636 = vst [vmem:[%s266 + $0x28] sm:$0xff] %v599
      %637 = vst [vmem:[%s266 + $0x30] sm:$0xff] %v603
      %638 = vst [vmem:[%s266 + $0x38] sm:$0xff] %v605
      %639 = vst [vmem:[%s266 + $0x40] sm:$0xff] %v609
      %640 = vst [vmem:[%s266 + $0x48] sm:$0xff] %v611
      %641 = vst [vmem:[%s266 + $0x50] sm:$0xff] %v615
      %642 = vst [vmem:[%s266 + $0x58] sm:$0xff] %v617
      %643 = vst [vmem:[%s266 + $0x60] sm:$0xff] %v621
      %644 = vst [vmem:[%s266 + $0x68] sm:$0xff] %v623
      %645 = vst [vmem:[%s266 + $0x70] sm:$0xff] %v627
      %646 = vst [vmem:[%s266 + $0x78] sm:$0xff] %v629
      %v647 = vadd.f32 %v585, %v591
      %v648 = vadd.f32 %v647, %v597
      %v649 = vadd.f32 %v648, %v603
      %v650 = vadd.f32 %v649, %v609
      %v651 = vadd.f32 %v650, %v615
      %v652 = vadd.f32 %v651, %v621
      %v653 = vadd.f32 %v652, %v627
      %v654 = vrot.slane %v653, 4
      %v655 = vadd.f32 %v653, %v654
      %v656 = vrot.slane %v655, 2
      %v657 = vadd.f32 %v655, %v656
      %v658 = vrot.slane %v657, 1
      %v659 = vadd.f32 %v657, %v658
      %v660 = vadd.f32 %v587, %v593
      %v661 = vadd.f32 %v660, %v599
      %v662 = vadd.f32 %v661, %v605
      %v663 = vadd.f32 %v662, %v611
      %v664 = vadd.f32 %v663, %v617
      %v665 = vadd.f32 %v664, %v623
      %v666 = vadd.f32 %v665, %v629
      %v667 = vrot.slane %v666, 4
      %v668 = vadd.f32 %v666, %v667
      %v669 = vrot.slane %v668, 2
      %v670 = vadd.f32 %v668, %v669
      %v671 = vrot.slane %v670, 1
      %v672 = vadd.f32 %v670, %v671
      %v673 = vmul.f32 %v585, %v585
      %v674 = vmul.f32 %v587, %v587
      %v675 = vmul.f32 %v591, %v591
      %v676 = vmul.f32 %v593, %v593
      %v677 = vmul.f32 %v597, %v597
      %v678 = vmul.f32 %v599, %v599
      %v679 = vmul.f32 %v603, %v603
      %v680 = vmul.f32 %v605, %v605
      %v681 = vmul.f32 %v609, %v609
      %v682 = vmul.f32 %v611, %v611
      %v683 = vmul.f32 %v615, %v615
      %v684 = vmul.f32 %v617, %v617
      %v685 = vmul.f32 %v621, %v621
      %v686 = vmul.f32 %v623, %v623
      %v687 = vmul.f32 %v627, %v627
      %v688 = vmul.f32 %v629, %v629
      %v689 = vadd.f32 %v673, %v675
      %v690 = vadd.f32 %v689, %v677
      %v691 = vadd.f32 %v690, %v679
      %v692 = vadd.f32 %v691, %v681
      %v693 = vadd.f32 %v692, %v683
      %v694 = vadd.f32 %v693, %v685
      %v695 = vadd.f32 %v694, %v687
      %v696 = vrot.slane %v695, 4
      %v697 = vadd.f32 %v695, %v696
      %v698 = vrot.slane %v697, 2
      %v699 = vadd.f32 %v697, %v698
      %v700 = vrot.slane %v699, 1
      %v701 = vadd.f32 %v699, %v700
      %v702 = vadd.f32 %v674, %v676
      %v703 = vadd.f32 %v702, %v678
      %v704 = vadd.f32 %v703, %v680
      %v705 = vadd.f32 %v704, %v682
      %v706 = vadd.f32 %v705, %v684
      %v707 = vadd.f32 %v706, %v686
      %v708 = vadd.f32 %v707, %v688
      %v709 = vrot.slane %v708, 4
      %v710 = vadd.f32 %v708, %v709
      %v711 = vrot.slane %v710, 2
      %v712 = vadd.f32 %v710, %v711
      %v713 = vrot.slane %v712, 1
      %v714 = vadd.f32 %v712, %v713
      %v715 = vlaneseq
      %v716 = vshrl.u32 %v715, 7
      %vm717 = vcmp.eq.s32.totalorder %v716, 0
      %vm718 = vcmp.eq.s32.totalorder %v716, 1
      %v719 = vsel %vm718, %v701, 0.0
      %v720 = vsel %vm718, %v714, 0.0
      %v721 = vsel %vm717, %v659, %v719
      %v722 = vsel %vm717, %v672, %v720
      %723 = vst [vmem:[%s272] sm:$0xff] %v721
      %724 = vst [vmem:[%s272 + $0x8] sm:$0xff] %v722
      %s725 = smul.u32 8, %s18
      %p726 = scmp.lt.s32.totalorder %s725, 15
      %s727 = scalar_select %p726, %s725, 15
      %s728 = smul.addr %s727, 2
      %s729 = smul.addr %s728, 8
      %s730 = scalar_lea.vmem %s5, %s729
      %p731 = scmp.lt.s32.totalorder %s18, 1
      %s732 = scalar_select %p731, %s18, 1
      %s733 = smul.addr %s732, 2
      %s734 = smul.addr %s733, 8
      %s735 = scalar_lea.vmem %s6, %s734
      // Predicated region
      $region41: #{neuralnet_forward.3} parent=39 // pred_check
        %p736 = pneg %p146
      $region42: #{neuralnet_forward.3} parent=39 // pred_check_branch
        %738 = sbr.rel (%p736) target = $region44
      $region43: #{neuralnet_forward.3} parent=39 // pred_region
        %s739 = smul.u32 8, %s18
      $region44: #{neuralnet_forward.3} parent=39 // pred_fallthru
        _
      // Predicated region
      $region45: #{neuralnet_forward.3} parent=39 // pred_check
        %p740 = pneg %p172
      $region46: #{neuralnet_forward.3} parent=39 // pred_check_branch
        %742 = sbr.rel (%p740) target = $region48
      $region47: #{neuralnet_forward.3} parent=39 // pred_region
        _
      $region48: #{neuralnet_forward.3} parent=39 // pred_fallthru
        _
    $region40: #{neuralnet_forward.3} parent=5 // pred_fallthru
      _
    %p743 = scmp.le.s32.totalorder 2, %s13
    // Predicated region
    $region49: #{neuralnet_forward.3} parent=5 // pred_check
      %p744 = pneg %p743
    $region50: #{neuralnet_forward.3} parent=5 // pred_check_branch
      %746 = sbr.rel (%p744) target = $region52
    $region51: #{neuralnet_forward.3} parent=5 // pred_region
      %s747 = ssub.s32 %s13, 2
      // Predicated region
      $region53: #{neuralnet_forward.3} parent=51 // pred_check
        %p748 = pneg %p152
      $region54: #{neuralnet_forward.3} parent=51 // pred_check_branch
        %750 = sbr.rel (%p748) target = $region56
      $region55: #{neuralnet_forward.3} parent=51 // pred_region
        %s751 = smul.u32 8, %s19
        %p752 = scmp.lt.s32.totalorder %s751, 15
        %s753 = scalar_select %p752, %s751, 15
        %s754 = smul.addr %s753, 2
        %s755 = smul.addr %s754, 8
        %s756 = scalar_lea.vmem %s5, %s755
      $region56: #{neuralnet_forward.3} parent=51 // pred_fallthru
        _
      // Predicated region
      $region57: #{neuralnet_forward.3} parent=51 // pred_check
        %p757 = pneg %p178
      $region58: #{neuralnet_forward.3} parent=51 // pred_check_branch
        %759 = sbr.rel (%p757) target = $region60
      $region59: #{neuralnet_forward.3} parent=51 // pred_region
        %p760 = scmp.lt.s32.totalorder %s19, 1
        %s761 = scalar_select %p760, %s19, 1
        %s762 = smul.addr %s761, 2
        %s763 = smul.addr %s762, 8
        %s764 = scalar_lea.vmem %s6, %s763
      $region60: #{neuralnet_forward.3} parent=51 // pred_fallthru
        _
    $region52: #{neuralnet_forward.3} parent=5 // pred_fallthru
      _
  $region6: #{neuralnet_forward.3} parent=0 // loop_footer
    %s17 = sadd.s32 1, %s13
  $region7: #{neuralnet_forward.3} parent=0 // loop_footer_branch
    %12 = sbr.rel target = $region3
  $region8: #{neuralnet_forward.3} parent=0 // loop_exit
    _

</llo_original>
